<compile_context>
chip_gen: v5e
topology: v5e:2x2
jax: 0.10.0
libtpu: 0.0.40
codegen_flags: <defaults>
</compile_context>

<pallas_src>
import functools
import math

import jax
import jax.numpy as jnp
from jax.experimental import pallas as pl
from jax.experimental.pallas import tpu as pltpu

VMEM_LIMIT = 48 * 1024 * 1024  # stays under v7x's 64 MiB physical VMEM


def _tile(dim, target, align):
    """Largest block <= target that divides `dim` and is a multiple of `align`;
    falls back to the full dimension (always a legal block shape)."""
    if dim <= target:
        return dim
    t = (target // align) * align
    while t >= align:
        if dim % t == 0:
            return t
        t -= align
    return dim


def _gelu_f32(x):
    # TODO(synk): HF RoBERTa uses exact erf GELU; tanh approximation kept here
    # for guaranteed Mosaic lowering (small numeric difference).
    c = math.sqrt(2.0 / math.pi)
    return 0.5 * x * (1.0 + jnp.tanh(c * (x + 0.044715 * x * x * x)))


# --------------------------- tiled linear (QKV) ----------------------------

def _matmul_bias_kernel(x_ref, w_ref, b_ref, o_ref, acc_ref):
    k = pl.program_id(2)

    @pl.when(k == 0)
    def _():
        acc_ref[...] = jnp.zeros_like(acc_ref)

    acc_ref[...] += jnp.dot(x_ref[...], w_ref[...],
                            preferred_element_type=jnp.float32)

    @pl.when(k == pl.num_programs(2) - 1)
    def _():
        o_ref[...] = (acc_ref[...] + b_ref[...]).astype(o_ref.dtype)


def pallas_linear(x, w, b, *, tm=256, tn=512, tk=512):
    """y = x @ w + b, bf16 operands, f32 accumulation, bf16 output."""
    M, K = x.shape
    N = w.shape[1]
    tm = _tile(M, tm, 8)
    tn = _tile(N, tn, 128)
    tk = _tile(K, tk, 128)
    grid = (M // tm, N // tn, K // tk)
    return pl.pallas_call(
        _matmul_bias_kernel,
        out_shape=jax.ShapeDtypeStruct((M, N), jnp.bfloat16),
        grid_spec=pltpu.PrefetchScalarGridSpec(
            num_scalar_prefetch=0,
            grid=grid,
            in_specs=[pl.BlockSpec((tm, tk), lambda i, j, k: (i, k)),
                      pl.BlockSpec((tk, tn), lambda i, j, k: (k, j)),
                      pl.BlockSpec((1, tn), lambda i, j, k: (0, j))],
            out_specs=pl.BlockSpec((tm, tn), lambda i, j, k: (i, j)),
            scratch_shapes=[pltpu.VMEM((tm, tn), jnp.float32)]),
        compiler_params=pltpu.CompilerParams(
            dimension_semantics=("parallel", "parallel", "arbitrary"),
            vmem_limit_bytes=VMEM_LIMIT),
    )(x, w, b.reshape(1, N))


# ----------------- tiled linear with fused residual + LN -------------------

def _matmul_add_ln_kernel(x_ref, w_ref, b_ref, res_ref, g_ref, beta_ref,
                          o_ref, acc_ref, *, eps):
    k = pl.program_id(1)

    @pl.when(k == 0)
    def _():
        acc_ref[...] = jnp.zeros_like(acc_ref)

    acc_ref[...] += jnp.dot(x_ref[...], w_ref[...],
                            preferred_element_type=jnp.float32)

    @pl.when(k == pl.num_programs(1) - 1)
    def _():
        y = acc_ref[...] + b_ref[...] + res_ref[...].astype(jnp.float32)
        mu = jnp.mean(y, axis=-1, keepdims=True)
        yc = y - mu
        var = jnp.mean(yc * yc, axis=-1, keepdims=True)
        out = yc * jax.lax.rsqrt(var + eps) * g_ref[...] + beta_ref[...]
        o_ref[...] = out.astype(o_ref.dtype)


def pallas_linear_add_ln(x, w, b, residual, gamma, beta, *,
                         eps=1e-5, tm=256, tk=512):
    """LayerNorm(x @ w + b + residual) with LN fused into the matmul epilogue.
    Output tile spans the full hidden dim (needed for the LN reduction)."""
    M, K = x.shape
    N = w.shape[1]
    tm = _tile(M, tm, 8)
    tk = _tile(K, tk, 128)
    grid = (M // tm, K // tk)
    return pl.pallas_call(
        functools.partial(_matmul_add_ln_kernel, eps=eps),
        out_shape=jax.ShapeDtypeStruct((M, N), jnp.bfloat16),
        grid_spec=pltpu.PrefetchScalarGridSpec(
            num_scalar_prefetch=0,
            grid=grid,
            in_specs=[pl.BlockSpec((tm, tk), lambda i, k: (i, k)),
                      pl.BlockSpec((tk, N), lambda i, k: (k, 0)),
                      pl.BlockSpec((1, N), lambda i, k: (0, 0)),
                      pl.BlockSpec((tm, N), lambda i, k: (i, 0)),
                      pl.BlockSpec((1, N), lambda i, k: (0, 0)),
                      pl.BlockSpec((1, N), lambda i, k: (0, 0))],
            out_specs=pl.BlockSpec((tm, N), lambda i, k: (i, 0)),
            scratch_shapes=[pltpu.VMEM((tm, N), jnp.float32)]),
        compiler_params=pltpu.CompilerParams(
            dimension_semantics=("parallel", "arbitrary"),
            vmem_limit_bytes=VMEM_LIMIT),
    )(x, w, b.reshape(1, N), residual,
      gamma.reshape(1, N), beta.reshape(1, N))


# ------------------ fused FFN (wi + GELU + wo2 + add + LN) ------------------

def _ffn_kernel(x_ref, wi_ref, bi_ref, wo2_ref, bo2_ref,
                res_ref, g_ref, beta_ref, o_ref, *, eps):
    x = x_ref[...]
    h1 = jnp.dot(x, wi_ref[...], preferred_element_type=jnp.float32)
    h1 = _gelu_f32(h1 + bi_ref[...])
    h2 = jnp.dot(h1.astype(wo2_ref.dtype), wo2_ref[...],
                 preferred_element_type=jnp.float32) + bo2_ref[...]
    y = h2 + res_ref[...].astype(jnp.float32)
    mu = jnp.mean(y, axis=-1, keepdims=True)
    yc = y - mu
    var = jnp.mean(yc * yc, axis=-1, keepdims=True)
    o_ref[...] = (yc * jax.lax.rsqrt(var + eps) * g_ref[...]
                  + beta_ref[...]).astype(o_ref.dtype)


def pallas_ffn_add_ln(x, wi, bi, wo2, bo2, residual, gamma, beta, *,
                      eps=1e-5, tm=256):
    """LayerNorm(GELU(x @ wi + bi) @ wo2 + bo2 + residual); the (tm, inter)
    intermediate stays in VMEM and never hits HBM."""
    M, H = x.shape
    inter = wi.shape[1]
    tm = _tile(M, tm, 8)
    grid = (M // tm,)
    return pl.pallas_call(
        functools.partial(_ffn_kernel, eps=eps),
        out_shape=jax.ShapeDtypeStruct((M, H), jnp.bfloat16),
        grid_spec=pltpu.PrefetchScalarGridSpec(
            num_scalar_prefetch=0,
            grid=grid,
            in_specs=[pl.BlockSpec((tm, H), lambda i: (i, 0)),
                      pl.BlockSpec((H, inter), lambda i: (0, 0)),
                      pl.BlockSpec((1, inter), lambda i: (0, 0)),
                      pl.BlockSpec((inter, H), lambda i: (0, 0)),
                      pl.BlockSpec((1, H), lambda i: (0, 0)),
                      pl.BlockSpec((tm, H), lambda i: (i, 0)),
                      pl.BlockSpec((1, H), lambda i: (0, 0)),
                      pl.BlockSpec((1, H), lambda i: (0, 0))],
            out_specs=pl.BlockSpec((tm, H), lambda i: (i, 0)),
        ),
        compiler_params=pltpu.CompilerParams(
            dimension_semantics=("parallel",),
            vmem_limit_bytes=VMEM_LIMIT),
    )(x, wi, bi.reshape(1, inter), wo2, bo2.reshape(1, H),
      residual, gamma.reshape(1, H), beta.reshape(1, H))


# ---------------------------- plain LayerNorm -------------------------------

def _ln_kernel(x_ref, g_ref, b_ref, o_ref, *, eps):
    x = x_ref[...].astype(jnp.float32)
    mu = jnp.mean(x, axis=-1, keepdims=True)
    xc = x - mu
    var = jnp.mean(xc * xc, axis=-1, keepdims=True)
    o_ref[...] = (xc * jax.lax.rsqrt(var + eps) * g_ref[...]
                  + b_ref[...]).astype(o_ref.dtype)


def pallas_layernorm(x, gamma, beta, *, eps=1e-5, tm=512):
    M, H = x.shape
    tm = _tile(M, tm, 8)
    grid = (M // tm,)
    return pl.pallas_call(
        functools.partial(_ln_kernel, eps=eps),
        out_shape=jax.ShapeDtypeStruct((M, H), jnp.bfloat16),
        grid_spec=pltpu.PrefetchScalarGridSpec(
            num_scalar_prefetch=0,
            grid=grid,
            in_specs=[pl.BlockSpec((tm, H), lambda i: (i, 0)),
                      pl.BlockSpec((1, H), lambda i: (0, 0)),
                      pl.BlockSpec((1, H), lambda i: (0, 0))],
            out_specs=pl.BlockSpec((tm, H), lambda i: (i, 0)),
        ),
        compiler_params=pltpu.CompilerParams(
            dimension_semantics=("parallel",),
            vmem_limit_bytes=VMEM_LIMIT),
    )(x, gamma.reshape(1, H), beta.reshape(1, H))


# ------------------------ flash-style attention -----------------------------

def _flash_attn_kernel(q_ref, k_ref, v_ref, bias_ref, o_ref,
                       m_scr, l_scr, acc_scr):
    ki = pl.program_id(2)

    @pl.when(ki == 0)
    def _():
        m_scr[...] = jnp.full_like(m_scr, -1e30)
        l_scr[...] = jnp.zeros_like(l_scr)
        acc_scr[...] = jnp.zeros_like(acc_scr)

    q = q_ref[0]   # (tq, dh) bf16, already scaled by 1/sqrt(dh)
    k = k_ref[0]   # (tk, dh) bf16
    s = jax.lax.dot_general(q, k, (((1,), (1,)), ((), ())),
                            preferred_element_type=jnp.float32)   # (tq, tk)
    s = s + bias_ref[0]                                           # additive mask

    m_prev = m_scr[...]
    m_new = jnp.maximum(m_prev, jnp.max(s, axis=-1, keepdims=True))
    alpha = jnp.exp(m_prev - m_new)
    p = jnp.exp(s - m_new)
    l_scr[...] = alpha * l_scr[...] + jnp.sum(p, axis=-1, keepdims=True)
    acc_scr[...] = alpha * acc_scr[...] + jnp.dot(
        p.astype(v_ref.dtype), v_ref[0], preferred_element_type=jnp.float32)
    m_scr[...] = m_new

    @pl.when(ki == pl.num_programs(2) - 1)
    def _():
        o_ref[0] = (acc_scr[...] *
                    pl.reciprocal(l_scr[...], approx=True)).astype(o_ref.dtype)


def pallas_flash_attention(q, k, v, bias, *, tq=256, tk=256):
    """q,k,v: (B*heads, S, dh) bf16; bias: (B*heads, 1, S) f32 additive mask."""
    # TODO(synk): pack >=2 heads per block (dh < 128 lanes) for denser stores.
    BH, S, dh = q.shape
    tq = _tile(S, tq, 8)
    tk = _tile(S, tk, 128)
    grid = (BH, S // tq, S // tk)
    return pl.pallas_call(
        _flash_attn_kernel,
        out_shape=jax.ShapeDtypeStruct((BH, S, dh), jnp.bfloat16),
        grid_spec=pltpu.PrefetchScalarGridSpec(
            num_scalar_prefetch=0,
            grid=grid,
            in_specs=[pl.BlockSpec((1, tq, dh), lambda b, qi, ki: (b, qi, 0)),
                      pl.BlockSpec((1, tk, dh), lambda b, qi, ki: (b, ki, 0)),
                      pl.BlockSpec((1, tk, dh), lambda b, qi, ki: (b, ki, 0)),
                      pl.BlockSpec((1, 1, tk), lambda b, qi, ki: (b, 0, ki))],
            out_specs=pl.BlockSpec((1, tq, dh), lambda b, qi, ki: (b, qi, 0)),
            scratch_shapes=[pltpu.VMEM((tq, 1), jnp.float32),
                            pltpu.VMEM((tq, 1), jnp.float32),
                            pltpu.VMEM((tq, dh), jnp.float32)]),
        compiler_params=pltpu.CompilerParams(
            dimension_semantics=("parallel", "parallel", "arbitrary"),
            vmem_limit_bytes=VMEM_LIMIT),
    )(q, k, v, bias)


# --------------------------- parameter creation -----------------------------

def init_params(key, *, vocab, max_pos, type_vocab, H, n_layers, n_heads,
                inter, out_dim):
    ks = iter(jax.random.split(key, 8 + 12 * n_layers))
    std = 0.02

    def normal(shape):
        return (std * jax.random.normal(next(ks), shape)).astype(jnp.float32)

    dh = H // n_heads
    scale = 1.0 / math.sqrt(dh)

    params = {
        "word_emb": normal((vocab, H)),
        "pos_emb": normal((max_pos, H)),
        "type_emb": normal((type_vocab, H)),
        "emb_ln_g": jnp.ones((H,), jnp.float32),
        "emb_ln_b": jnp.zeros((H,), jnp.float32),
        "layers": [],
        # classification head (pre_classifier: H->H, classifier: H->out_dim)
        "pre_w": normal((H, H)),
        "pre_b": jnp.zeros((H,), jnp.float32),
        "cls_w": normal((H, out_dim)),
        "cls_b": jnp.zeros((out_dim,), jnp.float32),
    }
    for _ in range(n_layers):
        wq, wk, wv = normal((H, H)), normal((H, H)), normal((H, H))
        bq = bk = bv = jnp.zeros((H,), jnp.float32)
        layer = {
            # fused QKV projection, 1/sqrt(dh) folded into the Q slice
            "wqkv": jnp.concatenate([wq * scale, wk, wv], axis=1
                                    ).astype(jnp.bfloat16),
            "bqkv": jnp.concatenate([bq * scale, bk, bv], axis=0),
            "wo": normal((H, H)).astype(jnp.bfloat16),
            "bo": jnp.zeros((H,), jnp.float32),
            "ln1_g": jnp.ones((H,), jnp.float32),
            "ln1_b": jnp.zeros((H,), jnp.float32),
            "wi": normal((H, inter)).astype(jnp.bfloat16),
            "bi": jnp.zeros((inter,), jnp.float32),
            "wo2": normal((inter, H)).astype(jnp.bfloat16),
            "bo2": jnp.zeros((H,), jnp.float32),
            "ln2_g": jnp.ones((H,), jnp.float32),
            "ln2_b": jnp.zeros((H,), jnp.float32),
        }
        params["layers"].append(layer)
    return params


# ------------------------------- forward pass -------------------------------

def roberta_sarc_forward(params, input_ids, attention_mask, token_type_ids,
                         *, n_heads):
    B, S = input_ids.shape
    H = params["word_emb"].shape[1]
    dh = H // n_heads
    assert params["pos_emb"].shape[0] >= S + 2, "max_pos must be >= S + 2"

    # ---- embeddings (gathers are XLA glue; LayerNorm in a Pallas kernel) ----
    mask_i = attention_mask.astype(jnp.int32)
    position_ids = jnp.cumsum(mask_i, axis=1) * mask_i + 1   # padding_idx=1 scheme
    emb = (jnp.take(params["word_emb"], input_ids, axis=0)
           + jnp.take(params["pos_emb"], position_ids, axis=0)
           + jnp.take(params["type_emb"], token_type_ids, axis=0))
    h = pallas_layernorm(emb.reshape(B * S, H),
                         params["emb_ln_g"], params["emb_ln_b"])  # (B*S, H) bf16

    # additive attention bias, computed once for all layers: 0 keep / -1e9 mask
    bias = (attention_mask.astype(jnp.float32) - 1.0) * 1e9      # (B, S)
    attn_bias = jnp.broadcast_to(bias[:, None, None, :],
                                 (B, n_heads, 1, S)).reshape(B * n_heads, 1, S)

    def split_heads(x2d):   # (B*S, H) -> (B*heads, S, dh)
        return (x2d.reshape(B, S, n_heads, dh).transpose(0, 2, 1, 3)
                .reshape(B * n_heads, S, dh))

    def merge_heads(x3d):   # (B*heads, S, dh) -> (B*S, H)
        return (x3d.reshape(B, n_heads, S, dh).transpose(0, 2, 1, 3)
                .reshape(B * S, H))

    for lp in params["layers"]:
        qkv = pallas_linear(h, lp["wqkv"], lp["bqkv"])            # (B*S, 3H)
        q = split_heads(qkv[:, :H])
        k = split_heads(qkv[:, H:2 * H])
        v = split_heads(qkv[:, 2 * H:])
        ctx = merge_heads(pallas_flash_attention(q, k, v, attn_bias))
        # attention output projection with fused residual-add + LayerNorm
        h = pallas_linear_add_ln(ctx, lp["wo"], lp["bo"], h,
                                 lp["ln1_g"], lp["ln1_b"])
        # fused FFN (GELU intermediate never leaves VMEM) + residual + LN
        h = pallas_ffn_add_ln(h, lp["wi"], lp["bi"], lp["wo2"], lp["bo2"],
                              h, lp["ln2_g"], lp["ln2_b"])

    # ---- classification head: tiny, kept in plain XLA (per perf review) ----
    pooled = h.reshape(B, S, H)[:, 0].astype(jnp.float32)        # CLS token
    pooled = jnp.maximum(pooled @ params["pre_w"] + params["pre_b"], 0.0)
    # Dropout is identity in eval mode.
    logits = pooled @ params["cls_w"] + params["cls_b"]
    return logits


# ------------------------------------ main -----------------------------------

if __name__ == "__main__":
    # Small shapes consistent with the module's forward:
    B, S = 2, 8          # batch, sequence length
    H = 32               # hidden_size (roberta-base would be 768)
    N_HEADS = 2
    N_LAYERS = 2
    INTER = 64           # intermediate FFN size
    VOCAB = 50
    MAX_POS = 64
    TYPE_VOCAB = 2
    OUT_DIM = 2          # classifier output_dim

    key = jax.random.PRNGKey(0)
    k_param, k_ids = jax.random.split(key)

    params = init_params(k_param, vocab=VOCAB, max_pos=MAX_POS,
                         type_vocab=TYPE_VOCAB, H=H, n_layers=N_LAYERS,
                         n_heads=N_HEADS, inter=INTER, out_dim=OUT_DIM)

    input_ids = jax.random.randint(k_ids, (B, S), 2, VOCAB, dtype=jnp.int32)
    attention_mask = jnp.array([[1, 1, 1, 1, 1, 1, 0, 0],
                                [1, 1, 1, 1, 1, 1, 1, 1]], dtype=jnp.int32)
    token_type_ids = jnp.zeros((B, S), dtype=jnp.int32)

    fwd = jax.jit(functools.partial(roberta_sarc_forward, n_heads=N_HEADS))
    logits = fwd(params, input_ids, attention_mask, token_type_ids)
    jax.block_until_ready(logits)
    assert logits.shape == (B, OUT_DIM)
    assert bool(jnp.all(jnp.isfinite(logits)))
    print("KERNEL_OK")
</pallas_src>

<mosaic_0001>
module attributes {stable_mosaic.version = 11 : i64} {
  func.func @_flash_attn_kernel(%arg0: i32, %arg1: i32, %arg2: i32, %arg3: memref<1x8x16xbf16, #tpu.memory_space<vmem>>, %arg4: memref<1x8x16xbf16, #tpu.memory_space<vmem>>, %arg5: memref<1x8x16xbf16, #tpu.memory_space<vmem>>, %arg6: memref<1x1x8xf32, #tpu.memory_space<vmem>>, %arg7: memref<1x8x16xbf16, #tpu.memory_space<vmem>>, %arg8: memref<8x1xf32, #tpu.memory_space<vmem>>, %arg9: memref<8x1xf32, #tpu.memory_space<vmem>>, %arg10: memref<8x16xf32, #tpu.memory_space<vmem>>) attributes {dimension_semantics = [#tpu.dimension_semantics<parallel>, #tpu.dimension_semantics<parallel>, #tpu.dimension_semantics<arbitrary>], iteration_bounds = array<i64: 4, 1, 1>, scalar_prefetch = 0 : i64, scratch_operands = 3 : i64, tpu.core_type = #tpu.core_type<tc>, window_params = [{transform_indices = @transform_0, window_bounds = array<i64: 1, 8, 16>}, {transform_indices = @transform_1, window_bounds = array<i64: 1, 8, 16>}, {transform_indices = @transform_2, window_bounds = array<i64: 1, 8, 16>}, {transform_indices = @transform_3, window_bounds = array<i64: 1, 1, 8>}, {transform_indices = @transform_4, window_bounds = array<i64: 1, 8, 16>}]} {
    %c0_i32 = arith.constant 0 : i32
    %0 = arith.cmpi eq, %arg2, %c0_i32 : i32
    %1 = arith.extui %0 : i1 to i32
    %c0_i32_0 = arith.constant 0 : i32
    %2 = arith.cmpi ne, %1, %c0_i32_0 : i32
    scf.if %2 {
      %cst_29 = arith.constant -1.000000e+30 : f32
      %40 = vector.broadcast %cst_29 : f32 to vector<8x1xf32>
      %c0_30 = arith.constant 0 : index
      %c0_31 = arith.constant 0 : index
      %41 = vector.load %arg8[%c0_30, %c0_31] : memref<8x1xf32, #tpu.memory_space<vmem>>, vector<8x1xf32>
      tpu.vector_store %arg8[%c0_30, %c0_31], %40 {strides = array<i32>} : memref<8x1xf32, #tpu.memory_space<vmem>>, vector<8x1xf32>,
      %cst_32 = arith.constant 0.000000e+00 : f32
      %42 = vector.broadcast %cst_32 : f32 to vector<8x1xf32>
      %c0_33 = arith.constant 0 : index
      %c0_34 = arith.constant 0 : index
      %43 = vector.load %arg9[%c0_33, %c0_34] : memref<8x1xf32, #tpu.memory_space<vmem>>, vector<8x1xf32>
      tpu.vector_store %arg9[%c0_33, %c0_34], %42 {strides = array<i32>} : memref<8x1xf32, #tpu.memory_space<vmem>>, vector<8x1xf32>,
      %cst_35 = arith.constant 0.000000e+00 : f32
      %44 = vector.broadcast %cst_35 : f32 to vector<8x16xf32>
      %c0_36 = arith.constant 0 : index
      %c0_37 = arith.constant 0 : index
      %45 = vector.load %arg10[%c0_36, %c0_37] : memref<8x16xf32, #tpu.memory_space<vmem>>, vector<8x16xf32>
      tpu.vector_store %arg10[%c0_36, %c0_37], %44 {strides = array<i32>} : memref<8x16xf32, #tpu.memory_space<vmem>>, vector<8x16xf32>,
    } else {
    }
    %c0 = arith.constant 0 : index
    %c0_1 = arith.constant 0 : index
    %c0_2 = arith.constant 0 : index
    %3 = vector.load %arg3[%c0, %c0_1, %c0_2] : memref<1x8x16xbf16, #tpu.memory_space<vmem>>, vector<1x8x16xbf16>
    %4 = vector.shape_cast %3 : vector<1x8x16xbf16> to vector<8x16xbf16>
    %c0_3 = arith.constant 0 : index
    %c0_4 = arith.constant 0 : index
    %c0_5 = arith.constant 0 : index
    %5 = vector.load %arg4[%c0_3, %c0_4, %c0_5] : memref<1x8x16xbf16, #tpu.memory_space<vmem>>, vector<1x8x16xbf16>
    %6 = vector.shape_cast %5 : vector<1x8x16xbf16> to vector<8x16xbf16>
    %cst = arith.constant dense<0.000000e+00> : vector<8x8xf32>
    %7 = tpu.matmul %4, %6, %cst {dimension_numbers = #tpu.dot_dimension_numbers<[1], [1], [0], [0], [0, 0, 1, 0], [], []>} : vector<8x16xbf16>, vector<8x16xbf16>, vector<8x8xf32> -> vector<8x8xf32>
    %c0_6 = arith.constant 0 : index
    %c0_7 = arith.constant 0 : index
    %c0_8 = arith.constant 0 : index
    %8 = vector.load %arg6[%c0_6, %c0_7, %c0_8] : memref<1x1x8xf32, #tpu.memory_space<vmem>>, vector<1x1x8xf32>
    %9 = vector.shape_cast %8 : vector<1x1x8xf32> to vector<1x8xf32>
    %10 = vector.broadcast %9 : vector<1x8xf32> to vector<8x8xf32>
    %11 = arith.addf %7, %10 : vector<8x8xf32>
    %c0_9 = arith.constant 0 : index
    %c0_10 = arith.constant 0 : index
    %12 = vector.load %arg8[%c0_9, %c0_10] : memref<8x1xf32, #tpu.memory_space<vmem>>, vector<8x1xf32>
    %cst_11 = arith.constant dense<0xFF800000> : vector<8xf32>
    %13 = vector.multi_reduction <maximumf>, %11, %cst_11 [1] : vector<8x8xf32> to vector<8xf32>
    %14 = vector.shape_cast %13 : vector<8xf32> to vector<8x1xf32>
    %15 = arith.maximumf %12, %14 : vector<8x1xf32>
    %16 = arith.subf %12, %15 : vector<8x1xf32>
    %17 = math.exp %16 : vector<8x1xf32>
    %18 = vector.broadcast %15 : vector<8x1xf32> to vector<8x8xf32>
    %19 = arith.subf %11, %18 : vector<8x8xf32>
    %20 = math.exp %19 : vector<8x8xf32>
    %c0_12 = arith.constant 0 : index
    %c0_13 = arith.constant 0 : index
    %21 = vector.load %arg9[%c0_12, %c0_13] : memref<8x1xf32, #tpu.memory_space<vmem>>, vector<8x1xf32>
    %22 = arith.mulf %17, %21 : vector<8x1xf32>
    %cst_14 = arith.constant dense<0.000000e+00> : vector<8xf32>
    %23 = vector.multi_reduction <add>, %20, %cst_14 [1] : vector<8x8xf32> to vector<8xf32>
    %24 = vector.shape_cast %23 : vector<8xf32> to vector<8x1xf32>
    %25 = arith.addf %22, %24 : vector<8x1xf32>
    %c0_15 = arith.constant 0 : index
    %c0_16 = arith.constant 0 : index
    %26 = vector.load %arg9[%c0_15, %c0_16] : memref<8x1xf32, #tpu.memory_space<vmem>>, vector<8x1xf32>
    tpu.vector_store %arg9[%c0_15, %c0_16], %25 {strides = array<i32>} : memref<8x1xf32, #tpu.memory_space<vmem>>, vector<8x1xf32>,
    %c0_17 = arith.constant 0 : index
    %c0_18 = arith.constant 0 : index
    %27 = vector.load %arg10[%c0_17, %c0_18] : memref<8x16xf32, #tpu.memory_space<vmem>>, vector<8x16xf32>
    %28 = vector.broadcast %17 : vector<8x1xf32> to vector<8x16xf32>
    %29 = arith.mulf %28, %27 : vector<8x16xf32>
    %30 = arith.truncf %20 : vector<8x8xf32> to vector<8x8xbf16>
    %c0_19 = arith.constant 0 : index
    %c0_20 = arith.constant 0 : index
    %c0_21 = arith.constant 0 : index
    %31 = vector.load %arg5[%c0_19, %c0_20, %c0_21] : memref<1x8x16xbf16, #tpu.memory_space<vmem>>, vector<1x8x16xbf16>
    %32 = vector.shape_cast %31 : vector<1x8x16xbf16> to vector<8x16xbf16>
    %cst_22 = arith.constant dense<0.000000e+00> : vector<8x16xf32>
    %33 = tpu.matmul %30, %32, %cst_22 {dimension_numbers = #tpu.dot_dimension_numbers<[1], [0], [0], [1], [0, 0, 1, 1], [], []>} : vector<8x8xbf16>, vector<8x16xbf16>, vector<8x16xf32> -> vector<8x16xf32>
    %34 = arith.addf %29, %33 : vector<8x16xf32>
    %c0_23 = arith.constant 0 : index
    %c0_24 = arith.constant 0 : index
    %35 = vector.load %arg10[%c0_23, %c0_24] : memref<8x16xf32, #tpu.memory_space<vmem>>, vector<8x16xf32>
    tpu.vector_store %arg10[%c0_23, %c0_24], %34 {strides = array<i32>} : memref<8x16xf32, #tpu.memory_space<vmem>>, vector<8x16xf32>,
    %c0_25 = arith.constant 0 : index
    %c0_26 = arith.constant 0 : index
    %36 = vector.load %arg8[%c0_25, %c0_26] : memref<8x1xf32, #tpu.memory_space<vmem>>, vector<8x1xf32>
    tpu.vector_store %arg8[%c0_25, %c0_26], %15 {strides = array<i32>} : memref<8x1xf32, #tpu.memory_space<vmem>>, vector<8x1xf32>,
    %c0_i32_27 = arith.constant 0 : i32
    %37 = arith.cmpi eq, %arg2, %c0_i32_27 : i32
    %38 = arith.extui %37 : i1 to i32
    %c0_i32_28 = arith.constant 0 : i32
    %39 = arith.cmpi ne, %38, %c0_i32_28 : i32
    scf.if %39 {
      %c0_29 = arith.constant 0 : index
      %c0_30 = arith.constant 0 : index
      %40 = vector.load %arg10[%c0_29, %c0_30] : memref<8x16xf32, #tpu.memory_space<vmem>>, vector<8x16xf32>
      %c0_31 = arith.constant 0 : index
      %c0_32 = arith.constant 0 : index
      %41 = vector.load %arg9[%c0_31, %c0_32] : memref<8x1xf32, #tpu.memory_space<vmem>>, vector<8x1xf32>
      %42 = tpu.reciprocal %41 {approx = true} : vector<8x1xf32> -> vector<8x1xf32>
      %43 = vector.broadcast %42 : vector<8x1xf32> to vector<8x16xf32>
      %44 = arith.mulf %40, %43 : vector<8x16xf32>
      %45 = arith.truncf %44 : vector<8x16xf32> to vector<8x16xbf16>
      %c0_33 = arith.constant 0 : index
      %c0_34 = arith.constant 0 : index
      %c0_35 = arith.constant 0 : index
      %46 = vector.load %arg7[%c0_33, %c0_34, %c0_35] : memref<1x8x16xbf16, #tpu.memory_space<vmem>>, vector<1x8x16xbf16>
      %47 = vector.shape_cast %46 : vector<1x8x16xbf16> to vector<8x16xbf16>
      %48 = vector.shape_cast %45 : vector<8x16xbf16> to vector<1x8x16xbf16>
      tpu.vector_store %arg7[%c0_33, %c0_34, %c0_35], %48 {strides = array<i32>} : memref<1x8x16xbf16, #tpu.memory_space<vmem>>, vector<1x8x16xbf16>,
    } else {
    }
    return
  }
  func.func @transform_0(%arg0: i32, %arg1: i32, %arg2: i32) -> (i32, i32, i32) {
    %c0_i32 = arith.constant 0 : i32
    %c0_i32_0 = arith.constant 0 : i32
    return %arg0, %arg1, %c0_i32 : i32, i32, i32
  }
  func.func @transform_1(%arg0: i32, %arg1: i32, %arg2: i32) -> (i32, i32, i32) {
    %c0_i32 = arith.constant 0 : i32
    %c0_i32_0 = arith.constant 0 : i32
    return %arg0, %arg2, %c0_i32 : i32, i32, i32
  }
  func.func @transform_2(%arg0: i32, %arg1: i32, %arg2: i32) -> (i32, i32, i32) {
    %c0_i32 = arith.constant 0 : i32
    %c0_i32_0 = arith.constant 0 : i32
    return %arg0, %arg2, %c0_i32 : i32, i32, i32
  }
  func.func @transform_3(%arg0: i32, %arg1: i32, %arg2: i32) -> (i32, i32, i32) {
    %c0_i32 = arith.constant 0 : i32
    %c0_i32_0 = arith.constant 0 : i32
    return %arg0, %c0_i32, %arg2 : i32, i32, i32
  }
  func.func @transform_4(%arg0: i32, %arg1: i32, %arg2: i32) -> (i32, i32, i32) {
    %c0_i32 = arith.constant 0 : i32
    %c0_i32_0 = arith.constant 0 : i32
    return %arg0, %arg1, %c0_i32 : i32, i32, i32
  }
}

module attributes {stable_mosaic.version = 11 : i64} {
  func.func @_matmul_bias_kernel(%arg0: i32, %arg1: i32, %arg2: i32, %arg3: memref<16x32xbf16, #tpu.memory_space<vmem>>, %arg4: memref<32x96xbf16, #tpu.memory_space<vmem>>, %arg5: memref<1x96xf32, #tpu.memory_space<vmem>>, %arg6: memref<16x96xbf16, #tpu.memory_space<vmem>>, %arg7: memref<16x96xf32, #tpu.memory_space<vmem>>) attributes {dimension_semantics = [#tpu.dimension_semantics<parallel>, #tpu.dimension_semantics<parallel>, #tpu.dimension_semantics<arbitrary>], iteration_bounds = array<i64: 1, 1, 1>, scalar_prefetch = 0 : i64, scratch_operands = 1 : i64, tpu.core_type = #tpu.core_type<tc>, window_params = [{transform_indices = @transform_0, window_bounds = array<i64: 16, 32>}, {transform_indices = @transform_1, window_bounds = array<i64: 32, 96>}, {transform_indices = @transform_2, window_bounds = array<i64: 1, 96>}, {transform_indices = @transform_3, window_bounds = array<i64: 16, 96>}]} {
    %c0_i32 = arith.constant 0 : i32
    %0 = arith.cmpi eq, %arg2, %c0_i32 : i32
    %1 = arith.extui %0 : i1 to i32
    %c0_i32_0 = arith.constant 0 : i32
    %2 = arith.cmpi ne, %1, %c0_i32_0 : i32
    scf.if %2 {
      %cst_10 = arith.constant 0.000000e+00 : f32
      %12 = vector.broadcast %cst_10 : f32 to vector<16x96xf32>
      %c0_11 = arith.constant 0 : index
      %c0_12 = arith.constant 0 : index
      %13 = vector.load %arg7[%c0_11, %c0_12] : memref<16x96xf32, #tpu.memory_space<vmem>>, vector<16x96xf32>
      tpu.vector_store %arg7[%c0_11, %c0_12], %12 {strides = array<i32>} : memref<16x96xf32, #tpu.memory_space<vmem>>, vector<16x96xf32>,
    } else {
    }
    %c0 = arith.constant 0 : index
    %c0_1 = arith.constant 0 : index
    %3 = vector.load %arg7[%c0, %c0_1] : memref<16x96xf32, #tpu.memory_space<vmem>>, vector<16x96xf32>
    %c0_2 = arith.constant 0 : index
    %c0_3 = arith.constant 0 : index
    %4 = vector.load %arg3[%c0_2, %c0_3] : memref<16x32xbf16, #tpu.memory_space<vmem>>, vector<16x32xbf16>
    %c0_4 = arith.constant 0 : index
    %c0_5 = arith.constant 0 : index
    %5 = vector.load %arg4[%c0_4, %c0_5] : memref<32x96xbf16, #tpu.memory_space<vmem>>, vector<32x96xbf16>
    %cst = arith.constant dense<0.000000e+00> : vector<16x96xf32>
    %6 = tpu.matmul %4, %5, %cst {dimension_numbers = #tpu.dot_dimension_numbers<[1], [0], [0], [1], [0, 0, 1, 1], [], []>} : vector<16x32xbf16>, vector<32x96xbf16>, vector<16x96xf32> -> vector<16x96xf32>
    %7 = arith.addf %3, %6 : vector<16x96xf32>
    %c0_6 = arith.constant 0 : index
    %c0_7 = arith.constant 0 : index
    %8 = vector.load %arg7[%c0_6, %c0_7] : memref<16x96xf32, #tpu.memory_space<vmem>>, vector<16x96xf32>
    tpu.vector_store %arg7[%c0_6, %c0_7], %7 {strides = array<i32>} : memref<16x96xf32, #tpu.memory_space<vmem>>, vector<16x96xf32>,
    %c0_i32_8 = arith.constant 0 : i32
    %9 = arith.cmpi eq, %arg2, %c0_i32_8 : i32
    %10 = arith.extui %9 : i1 to i32
    %c0_i32_9 = arith.constant 0 : i32
    %11 = arith.cmpi ne, %10, %c0_i32_9 : i32
    scf.if %11 {
      %c0_10 = arith.constant 0 : index
      %c0_11 = arith.constant 0 : index
      %12 = vector.load %arg7[%c0_10, %c0_11] : memref<16x96xf32, #tpu.memory_space<vmem>>, vector<16x96xf32>
      %c0_12 = arith.constant 0 : index
      %c0_13 = arith.constant 0 : index
      %13 = vector.load %arg5[%c0_12, %c0_13] : memref<1x96xf32, #tpu.memory_space<vmem>>, vector<1x96xf32>
      %14 = vector.broadcast %13 : vector<1x96xf32> to vector<16x96xf32>
      %15 = arith.addf %12, %14 : vector<16x96xf32>
      %16 = arith.truncf %15 : vector<16x96xf32> to vector<16x96xbf16>
      %c0_14 = arith.constant 0 : index
      %c0_15 = arith.constant 0 : index
      %17 = vector.load %arg6[%c0_14, %c0_15] : memref<16x96xbf16, #tpu.memory_space<vmem>>, vector<16x96xbf16>
      tpu.vector_store %arg6[%c0_14, %c0_15], %16 {strides = array<i32>} : memref<16x96xbf16, #tpu.memory_space<vmem>>, vector<16x96xbf16>,
    } else {
    }
    return
  }
  func.func @transform_0(%arg0: i32, %arg1: i32, %arg2: i32) -> (i32, i32) {
    %c0_i32 = arith.constant 0 : i32
    return %arg0, %arg2 : i32, i32
  }
  func.func @transform_1(%arg0: i32, %arg1: i32, %arg2: i32) -> (i32, i32) {
    %c0_i32 = arith.constant 0 : i32
    return %arg2, %arg1 : i32, i32
  }
  func.func @transform_2(%arg0: i32, %arg1: i32, %arg2: i32) -> (i32, i32) {
    %c0_i32 = arith.constant 0 : i32
    %c0_i32_0 = arith.constant 0 : i32
    return %c0_i32, %arg1 : i32, i32
  }
  func.func @transform_3(%arg0: i32, %arg1: i32, %arg2: i32) -> (i32, i32) {
    %c0_i32 = arith.constant 0 : i32
    return %arg0, %arg1 : i32, i32
  }
}

module attributes {stable_mosaic.version = 11 : i64} {
  func.func @_ln_kernel(%arg0: i32, %arg1: memref<16x32xf32, #tpu.memory_space<vmem>>, %arg2: memref<1x32xf32, #tpu.memory_space<vmem>>, %arg3: memref<1x32xf32, #tpu.memory_space<vmem>>, %arg4: memref<16x32xbf16, #tpu.memory_space<vmem>>) attributes {dimension_semantics = [#tpu.dimension_semantics<parallel>], iteration_bounds = array<i64: 1>, scalar_prefetch = 0 : i64, scratch_operands = 0 : i64, tpu.core_type = #tpu.core_type<tc>, window_params = [{transform_indices = @transform_0, window_bounds = array<i64: 16, 32>}, {pipeline_mode = #tpu.pipeline_mode<synchronous>, transform_indices = @transform_1, window_bounds = array<i64: 1, 32>}, {pipeline_mode = #tpu.pipeline_mode<synchronous>, transform_indices = @transform_2, window_bounds = array<i64: 1, 32>}, {transform_indices = @transform_3, window_bounds = array<i64: 16, 32>}]} {
    %c0 = arith.constant 0 : index
    %c0_0 = arith.constant 0 : index
    %0 = vector.load %arg1[%c0, %c0_0] : memref<16x32xf32, #tpu.memory_space<vmem>>, vector<16x32xf32>
    %cst = arith.constant dense<0.000000e+00> : vector<16xf32>
    %1 = vector.multi_reduction <add>, %0, %cst [1] : vector<16x32xf32> to vector<16xf32>
    %2 = vector.shape_cast %1 : vector<16xf32> to vector<16x1xf32>
    %cst_1 = arith.constant 3.200000e+01 : f32
    %3 = vector.broadcast %cst_1 : f32 to vector<16x1xf32>
    %4 = arith.divf %2, %3 : vector<16x1xf32>
    %5 = vector.broadcast %4 : vector<16x1xf32> to vector<16x32xf32>
    %6 = arith.subf %0, %5 : vector<16x32xf32>
    %7 = arith.mulf %6, %6 : vector<16x32xf32>
    %cst_2 = arith.constant dense<0.000000e+00> : vector<16xf32>
    %8 = vector.multi_reduction <add>, %7, %cst_2 [1] : vector<16x32xf32> to vector<16xf32>
    %9 = vector.shape_cast %8 : vector<16xf32> to vector<16x1xf32>
    %cst_3 = arith.constant 3.200000e+01 : f32
    %10 = vector.broadcast %cst_3 : f32 to vector<16x1xf32>
    %11 = arith.divf %9, %10 : vector<16x1xf32>
    %cst_4 = arith.constant 9.99999974E-6 : f32
    %12 = vector.broadcast %cst_4 : f32 to vector<16x1xf32>
    %13 = arith.addf %11, %12 : vector<16x1xf32>
    %14 = math.rsqrt %13 : vector<16x1xf32>
    %15 = vector.broadcast %14 : vector<16x1xf32> to vector<16x32xf32>
    %16 = arith.mulf %6, %15 : vector<16x32xf32>
    %c0_5 = arith.constant 0 : index
    %c0_6 = arith.constant 0 : index
    %17 = vector.load %arg2[%c0_5, %c0_6] : memref<1x32xf32, #tpu.memory_space<vmem>>, vector<1x32xf32>
    %18 = vector.broadcast %17 : vector<1x32xf32> to vector<16x32xf32>
    %19 = arith.mulf %16, %18 : vector<16x32xf32>
    %c0_7 = arith.constant 0 : index
    %c0_8 = arith.constant 0 : index
    %20 = vector.load %arg3[%c0_7, %c0_8] : memref<1x32xf32, #tpu.memory_space<vmem>>, vector<1x32xf32>
    %21 = vector.broadcast %20 : vector<1x32xf32> to vector<16x32xf32>
    %22 = arith.addf %19, %21 : vector<16x32xf32>
    %23 = arith.truncf %22 : vector<16x32xf32> to vector<16x32xbf16>
    %c0_9 = arith.constant 0 : index
    %c0_10 = arith.constant 0 : index
    %24 = vector.load %arg4[%c0_9, %c0_10] : memref<16x32xbf16, #tpu.memory_space<vmem>>, vector<16x32xbf16>
    tpu.vector_store %arg4[%c0_9, %c0_10], %23 {strides = array<i32>} : memref<16x32xbf16, #tpu.memory_space<vmem>>, vector<16x32xbf16>,
    return
  }
  func.func @transform_0(%arg0: i32) -> (i32, i32) {
    %c0_i32 = arith.constant 0 : i32
    %c0_i32_0 = arith.constant 0 : i32
    return %arg0, %c0_i32 : i32, i32
  }
  func.func @transform_1(%arg0: i32) -> (i32, i32) {
    %c0_i32 = arith.constant 0 : i32
    %c0_i32_0 = arith.constant 0 : i32
    %c0_i32_1 = arith.constant 0 : i32
    return %c0_i32, %c0_i32_0 : i32, i32
  }
  func.func @transform_2(%arg0: i32) -> (i32, i32) {
    %c0_i32 = arith.constant 0 : i32
    %c0_i32_0 = arith.constant 0 : i32
    %c0_i32_1 = arith.constant 0 : i32
    return %c0_i32, %c0_i32_0 : i32, i32
  }
  func.func @transform_3(%arg0: i32) -> (i32, i32) {
    %c0_i32 = arith.constant 0 : i32
    %c0_i32_0 = arith.constant 0 : i32
    return %arg0, %c0_i32 : i32, i32
  }
}

module attributes {stable_mosaic.version = 11 : i64} {
  func.func @_matmul_add_ln_kernel(%arg0: i32, %arg1: i32, %arg2: memref<16x32xbf16, #tpu.memory_space<vmem>>, %arg3: memref<32x32xbf16, #tpu.memory_space<vmem>>, %arg4: memref<1x32xf32, #tpu.memory_space<vmem>>, %arg5: memref<16x32xbf16, #tpu.memory_space<vmem>>, %arg6: memref<1x32xf32, #tpu.memory_space<vmem>>, %arg7: memref<1x32xf32, #tpu.memory_space<vmem>>, %arg8: memref<16x32xbf16, #tpu.memory_space<vmem>>, %arg9: memref<16x32xf32, #tpu.memory_space<vmem>>) attributes {dimension_semantics = [#tpu.dimension_semantics<parallel>, #tpu.dimension_semantics<arbitrary>], iteration_bounds = array<i64: 1, 1>, scalar_prefetch = 0 : i64, scratch_operands = 1 : i64, tpu.core_type = #tpu.core_type<tc>, window_params = [{transform_indices = @transform_0, window_bounds = array<i64: 16, 32>}, {transform_indices = @transform_1, window_bounds = array<i64: 32, 32>}, {pipeline_mode = #tpu.pipeline_mode<synchronous>, transform_indices = @transform_2, window_bounds = array<i64: 1, 32>}, {transform_indices = @transform_3, window_bounds = array<i64: 16, 32>}, {pipeline_mode = #tpu.pipeline_mode<synchronous>, transform_indices = @transform_4, window_bounds = array<i64: 1, 32>}, {pipeline_mode = #tpu.pipeline_mode<synchronous>, transform_indices = @transform_5, window_bounds = array<i64: 1, 32>}, {transform_indices = @transform_6, window_bounds = array<i64: 16, 32>}]} {
    %c0_i32 = arith.constant 0 : i32
    %0 = arith.cmpi eq, %arg1, %c0_i32 : i32
    %1 = arith.extui %0 : i1 to i32
    %c0_i32_0 = arith.constant 0 : i32
    %2 = arith.cmpi ne, %1, %c0_i32_0 : i32
    scf.if %2 {
      %cst_10 = arith.constant 0.000000e+00 : f32
      %12 = vector.broadcast %cst_10 : f32 to vector<16x32xf32>
      %c0_11 = arith.constant 0 : index
      %c0_12 = arith.constant 0 : index
      %13 = vector.load %arg9[%c0_11, %c0_12] : memref<16x32xf32, #tpu.memory_space<vmem>>, vector<16x32xf32>
      tpu.vector_store %arg9[%c0_11, %c0_12], %12 {strides = array<i32>} : memref<16x32xf32, #tpu.memory_space<vmem>>, vector<16x32xf32>,
    } else {
    }
    %c0 = arith.constant 0 : index
    %c0_1 = arith.constant 0 : index
    %3 = vector.load %arg9[%c0, %c0_1] : memref<16x32xf32, #tpu.memory_space<vmem>>, vector<16x32xf32>
    %c0_2 = arith.constant 0 : index
    %c0_3 = arith.constant 0 : index
    %4 = vector.load %arg2[%c0_2, %c0_3] : memref<16x32xbf16, #tpu.memory_space<vmem>>, vector<16x32xbf16>
    %c0_4 = arith.constant 0 : index
    %c0_5 = arith.constant 0 : index
    %5 = vector.load %arg3[%c0_4, %c0_5] : memref<32x32xbf16, #tpu.memory_space<vmem>>, vector<32x32xbf16>
    %cst = arith.constant dense<0.000000e+00> : vector<16x32xf32>
    %6 = tpu.matmul %4, %5, %cst {dimension_numbers = #tpu.dot_dimension_numbers<[1], [0], [0], [1], [0, 0, 1, 1], [], []>} : vector<16x32xbf16>, vector<32x32xbf16>, vector<16x32xf32> -> vector<16x32xf32>
    %7 = arith.addf %3, %6 : vector<16x32xf32>
    %c0_6 = arith.constant 0 : index
    %c0_7 = arith.constant 0 : index
    %8 = vector.load %arg9[%c0_6, %c0_7] : memref<16x32xf32, #tpu.memory_space<vmem>>, vector<16x32xf32>
    tpu.vector_store %arg9[%c0_6, %c0_7], %7 {strides = array<i32>} : memref<16x32xf32, #tpu.memory_space<vmem>>, vector<16x32xf32>,
    %c0_i32_8 = arith.constant 0 : i32
    %9 = arith.cmpi eq, %arg1, %c0_i32_8 : i32
    %10 = arith.extui %9 : i1 to i32
    %c0_i32_9 = arith.constant 0 : i32
    %11 = arith.cmpi ne, %10, %c0_i32_9 : i32
    scf.if %11 {
      %c0_10 = arith.constant 0 : index
      %c0_11 = arith.constant 0 : index
      %12 = vector.load %arg9[%c0_10, %c0_11] : memref<16x32xf32, #tpu.memory_space<vmem>>, vector<16x32xf32>
      %c0_12 = arith.constant 0 : index
      %c0_13 = arith.constant 0 : index
      %13 = vector.load %arg4[%c0_12, %c0_13] : memref<1x32xf32, #tpu.memory_space<vmem>>, vector<1x32xf32>
      %14 = vector.broadcast %13 : vector<1x32xf32> to vector<16x32xf32>
      %15 = arith.addf %12, %14 : vector<16x32xf32>
      %c0_14 = arith.constant 0 : index
      %c0_15 = arith.constant 0 : index
      %16 = vector.load %arg5[%c0_14, %c0_15] : memref<16x32xbf16, #tpu.memory_space<vmem>>, vector<16x32xbf16>
      %17 = arith.extf %16 : vector<16x32xbf16> to vector<16x32xf32>
      %18 = arith.addf %15, %17 : vector<16x32xf32>
      %cst_16 = arith.constant dense<0.000000e+00> : vector<16xf32>
      %19 = vector.multi_reduction <add>, %18, %cst_16 [1] : vector<16x32xf32> to vector<16xf32>
      %20 = vector.shape_cast %19 : vector<16xf32> to vector<16x1xf32>
      %cst_17 = arith.constant 3.200000e+01 : f32
      %21 = vector.broadcast %cst_17 : f32 to vector<16x1xf32>
      %22 = arith.divf %20, %21 : vector<16x1xf32>
      %23 = vector.broadcast %22 : vector<16x1xf32> to vector<16x32xf32>
      %24 = arith.subf %18, %23 : vector<16x32xf32>
      %25 = arith.mulf %24, %24 : vector<16x32xf32>
      %cst_18 = arith.constant dense<0.000000e+00> : vector<16xf32>
      %26 = vector.multi_reduction <add>, %25, %cst_18 [1] : vector<16x32xf32> to vector<16xf32>
      %27 = vector.shape_cast %26 : vector<16xf32> to vector<16x1xf32>
      %cst_19 = arith.constant 3.200000e+01 : f32
      %28 = vector.broadcast %cst_19 : f32 to vector<16x1xf32>
      %29 = arith.divf %27, %28 : vector<16x1xf32>
      %cst_20 = arith.constant 9.99999974E-6 : f32
      %30 = vector.broadcast %cst_20 : f32 to vector<16x1xf32>
      %31 = arith.addf %29, %30 : vector<16x1xf32>
      %32 = math.rsqrt %31 : vector<16x1xf32>
      %33 = vector.broadcast %32 : vector<16x1xf32> to vector<16x32xf32>
      %34 = arith.mulf %24, %33 : vector<16x32xf32>
      %c0_21 = arith.constant 0 : index
      %c0_22 = arith.constant 0 : index
      %35 = vector.load %arg6[%c0_21, %c0_22] : memref<1x32xf32, #tpu.memory_space<vmem>>, vector<1x32xf32>
      %36 = vector.broadcast %35 : vector<1x32xf32> to vector<16x32xf32>
      %37 = arith.mulf %34, %36 : vector<16x32xf32>
      %c0_23 = arith.constant 0 : index
      %c0_24 = arith.constant 0 : index
      %38 = vector.load %arg7[%c0_23, %c0_24] : memref<1x32xf32, #tpu.memory_space<vmem>>, vector<1x32xf32>
      %39 = vector.broadcast %38 : vector<1x32xf32> to vector<16x32xf32>
      %40 = arith.addf %37, %39 : vector<16x32xf32>
      %41 = arith.truncf %40 : vector<16x32xf32> to vector<16x32xbf16>
      %c0_25 = arith.constant 0 : index
      %c0_26 = arith.constant 0 : index
      %42 = vector.load %arg8[%c0_25, %c0_26] : memref<16x32xbf16, #tpu.memory_space<vmem>>, vector<16x32xbf16>
      tpu.vector_store %arg8[%c0_25, %c0_26], %41 {strides = array<i32>} : memref<16x32xbf16, #tpu.memory_space<vmem>>, vector<16x32xbf16>,
    } else {
    }
    return
  }
  func.func @transform_0(%arg0: i32, %arg1: i32) -> (i32, i32) {
    %c0_i32 = arith.constant 0 : i32
    return %arg0, %arg1 : i32, i32
  }
  func.func @transform_1(%arg0: i32, %arg1: i32) -> (i32, i32) {
    %c0_i32 = arith.constant 0 : i32
    %c0_i32_0 = arith.constant 0 : i32
    return %arg1, %c0_i32 : i32, i32
  }
  func.func @transform_2(%arg0: i32, %arg1: i32) -> (i32, i32) {
    %c0_i32 = arith.constant 0 : i32
    %c0_i32_0 = arith.constant 0 : i32
    %c0_i32_1 = arith.constant 0 : i32
    return %c0_i32, %c0_i32_0 : i32, i32
  }
  func.func @transform_3(%arg0: i32, %arg1: i32) -> (i32, i32) {
    %c0_i32 = arith.constant 0 : i32
    %c0_i32_0 = arith.constant 0 : i32
    return %arg0, %c0_i32 : i32, i32
  }
  func.func @transform_4(%arg0: i32, %arg1: i32) -> (i32, i32) {
    %c0_i32 = arith.constant 0 : i32
    %c0_i32_0 = arith.constant 0 : i32
    %c0_i32_1 = arith.constant 0 : i32
    return %c0_i32, %c0_i32_0 : i32, i32
  }
  func.func @transform_5(%arg0: i32, %arg1: i32) -> (i32, i32) {
    %c0_i32 = arith.constant 0 : i32
    %c0_i32_0 = arith.constant 0 : i32
    %c0_i32_1 = arith.constant 0 : i32
    return %c0_i32, %c0_i32_0 : i32, i32
  }
  func.func @transform_6(%arg0: i32, %arg1: i32) -> (i32, i32) {
    %c0_i32 = arith.constant 0 : i32
    %c0_i32_0 = arith.constant 0 : i32
    return %arg0, %c0_i32 : i32, i32
  }
}

module attributes {stable_mosaic.version = 11 : i64} {
  func.func @_ffn_kernel(%arg0: i32, %arg1: memref<16x32xbf16, #tpu.memory_space<vmem>>, %arg2: memref<32x64xbf16, #tpu.memory_space<vmem>>, %arg3: memref<1x64xf32, #tpu.memory_space<vmem>>, %arg4: memref<64x32xbf16, #tpu.memory_space<vmem>>, %arg5: memref<1x32xf32, #tpu.memory_space<vmem>>, %arg6: memref<16x32xbf16, #tpu.memory_space<vmem>>, %arg7: memref<1x32xf32, #tpu.memory_space<vmem>>, %arg8: memref<1x32xf32, #tpu.memory_space<vmem>>, %arg9: memref<16x32xbf16, #tpu.memory_space<vmem>>) attributes {dimension_semantics = [#tpu.dimension_semantics<parallel>], iteration_bounds = array<i64: 1>, scalar_prefetch = 0 : i64, scratch_operands = 0 : i64, tpu.core_type = #tpu.core_type<tc>, window_params = [{transform_indices = @transform_0, window_bounds = array<i64: 16, 32>}, {pipeline_mode = #tpu.pipeline_mode<synchronous>, transform_indices = @transform_1, window_bounds = array<i64: 32, 64>}, {pipeline_mode = #tpu.pipeline_mode<synchronous>, transform_indices = @transform_2, window_bounds = array<i64: 1, 64>}, {pipeline_mode = #tpu.pipeline_mode<synchronous>, transform_indices = @transform_3, window_bounds = array<i64: 64, 32>}, {pipeline_mode = #tpu.pipeline_mode<synchronous>, transform_indices = @transform_4, window_bounds = array<i64: 1, 32>}, {transform_indices = @transform_5, window_bounds = array<i64: 16, 32>}, {pipeline_mode = #tpu.pipeline_mode<synchronous>, transform_indices = @transform_6, window_bounds = array<i64: 1, 32>}, {pipeline_mode = #tpu.pipeline_mode<synchronous>, transform_indices = @transform_7, window_bounds = array<i64: 1, 32>}, {transform_indices = @transform_8, window_bounds = array<i64: 16, 32>}]} {
    %c0 = arith.constant 0 : index
    %c0_0 = arith.constant 0 : index
    %0 = vector.load %arg1[%c0, %c0_0] : memref<16x32xbf16, #tpu.memory_space<vmem>>, vector<16x32xbf16>
    %c0_1 = arith.constant 0 : index
    %c0_2 = arith.constant 0 : index
    %1 = vector.load %arg2[%c0_1, %c0_2] : memref<32x64xbf16, #tpu.memory_space<vmem>>, vector<32x64xbf16>
    %cst = arith.constant dense<0.000000e+00> : vector<16x64xf32>
    %2 = tpu.matmul %0, %1, %cst {dimension_numbers = #tpu.dot_dimension_numbers<[1], [0], [0], [1], [0, 0, 1, 1], [], []>} : vector<16x32xbf16>, vector<32x64xbf16>, vector<16x64xf32> -> vector<16x64xf32>
    %c0_3 = arith.constant 0 : index
    %c0_4 = arith.constant 0 : index
    %3 = vector.load %arg3[%c0_3, %c0_4] : memref<1x64xf32, #tpu.memory_space<vmem>>, vector<1x64xf32>
    %4 = vector.broadcast %3 : vector<1x64xf32> to vector<16x64xf32>
    %5 = arith.addf %2, %4 : vector<16x64xf32>
    %cst_5 = arith.constant 5.000000e-01 : f32
    %6 = vector.broadcast %cst_5 : f32 to vector<16x64xf32>
    %7 = arith.mulf %6, %5 : vector<16x64xf32>
    %cst_6 = arith.constant 4.471500e-02 : f32
    %8 = vector.broadcast %cst_6 : f32 to vector<16x64xf32>
    %9 = arith.mulf %8, %5 : vector<16x64xf32>
    %10 = arith.mulf %9, %5 : vector<16x64xf32>
    %11 = arith.mulf %10, %5 : vector<16x64xf32>
    %12 = arith.addf %5, %11 : vector<16x64xf32>
    %cst_7 = arith.constant 0.797884583 : f32
    %13 = vector.broadcast %cst_7 : f32 to vector<16x64xf32>
    %14 = arith.mulf %13, %12 : vector<16x64xf32>
    %15 = math.tanh %14 : vector<16x64xf32>
    %cst_8 = arith.constant 1.000000e+00 : f32
    %16 = vector.broadcast %cst_8 : f32 to vector<16x64xf32>
    %17 = arith.addf %16, %15 : vector<16x64xf32>
    %18 = arith.mulf %7, %17 : vector<16x64xf32>
    %19 = arith.truncf %18 : vector<16x64xf32> to vector<16x64xbf16>
    %c0_9 = arith.constant 0 : index
    %c0_10 = arith.constant 0 : index
    %20 = vector.load %arg4[%c0_9, %c0_10] : memref<64x32xbf16, #tpu.memory_space<vmem>>, vector<64x32xbf16>
    %cst_11 = arith.constant dense<0.000000e+00> : vector<16x32xf32>
    %21 = tpu.matmul %19, %20, %cst_11 {dimension_numbers = #tpu.dot_dimension_numbers<[1], [0], [0], [1], [0, 0, 1, 1], [], []>} : vector<16x64xbf16>, vector<64x32xbf16>, vector<16x32xf32> -> vector<16x32xf32>
    %c0_12 = arith.constant 0 : index
    %c0_13 = arith.constant 0 : index
    %22 = vector.load %arg5[%c0_12, %c0_13] : memref<1x32xf32, #tpu.memory_space<vmem>>, vector<1x32xf32>
    %23 = vector.broadcast %22 : vector<1x32xf32> to vector<16x32xf32>
    %24 = arith.addf %21, %23 : vector<16x32xf32>
    %c0_14 = arith.constant 0 : index
    %c0_15 = arith.constant 0 : index
    %25 = vector.load %arg6[%c0_14, %c0_15] : memref<16x32xbf16, #tpu.memory_space<vmem>>, vector<16x32xbf16>
    %26 = arith.extf %25 : vector<16x32xbf16> to vector<16x32xf32>
    %27 = arith.addf %24, %26 : vector<16x32xf32>
    %cst_16 = arith.constant dense<0.000000e+00> : vector<16xf32>
    %28 = vector.multi_reduction <add>, %27, %cst_16 [1] : vector<16x32xf32> to vector<16xf32>
    %29 = vector.shape_cast %28 : vector<16xf32> to vector<16x1xf32>
    %cst_17 = arith.constant 3.200000e+01 : f32
    %30 = vector.broadcast %cst_17 : f32 to vector<16x1xf32>
    %31 = arith.divf %29, %30 : vector<16x1xf32>
    %32 = vector.broadcast %31 : vector<16x1xf32> to vector<16x32xf32>
    %33 = arith.subf %27, %32 : vector<16x32xf32>
    %34 = arith.mulf %33, %33 : vector<16x32xf32>
    %cst_18 = arith.constant dense<0.000000e+00> : vector<16xf32>
    %35 = vector.multi_reduction <add>, %34, %cst_18 [1] : vector<16x32xf32> to vector<16xf32>
    %36 = vector.shape_cast %35 : vector<16xf32> to vector<16x1xf32>
    %cst_19 = arith.constant 3.200000e+01 : f32
    %37 = vector.broadcast %cst_19 : f32 to vector<16x1xf32>
    %38 = arith.divf %36, %37 : vector<16x1xf32>
    %cst_20 = arith.constant 9.99999974E-6 : f32
    %39 = vector.broadcast %cst_20 : f32 to vector<16x1xf32>
    %40 = arith.addf %38, %39 : vector<16x1xf32>
    %41 = math.rsqrt %40 : vector<16x1xf32>
    %42 = vector.broadcast %41 : vector<16x1xf32> to vector<16x32xf32>
    %43 = arith.mulf %33, %42 : vector<16x32xf32>
    %c0_21 = arith.constant 0 : index
    %c0_22 = arith.constant 0 : index
    %44 = vector.load %arg7[%c0_21, %c0_22] : memref<1x32xf32, #tpu.memory_space<vmem>>, vector<1x32xf32>
    %45 = vector.broadcast %44 : vector<1x32xf32> to vector<16x32xf32>
    %46 = arith.mulf %43, %45 : vector<16x32xf32>
    %c0_23 = arith.constant 0 : index
    %c0_24 = arith.constant 0 : index
    %47 = vector.load %arg8[%c0_23, %c0_24] : memref<1x32xf32, #tpu.memory_space<vmem>>, vector<1x32xf32>
    %48 = vector.broadcast %47 : vector<1x32xf32> to vector<16x32xf32>
    %49 = arith.addf %46, %48 : vector<16x32xf32>
    %50 = arith.truncf %49 : vector<16x32xf32> to vector<16x32xbf16>
    %c0_25 = arith.constant 0 : index
    %c0_26 = arith.constant 0 : index
    %51 = vector.load %arg9[%c0_25, %c0_26] : memref<16x32xbf16, #tpu.memory_space<vmem>>, vector<16x32xbf16>
    tpu.vector_store %arg9[%c0_25, %c0_26], %50 {strides = array<i32>} : memref<16x32xbf16, #tpu.memory_space<vmem>>, vector<16x32xbf16>,
    return
  }
  func.func @transform_0(%arg0: i32) -> (i32, i32) {
    %c0_i32 = arith.constant 0 : i32
    %c0_i32_0 = arith.constant 0 : i32
    return %arg0, %c0_i32 : i32, i32
  }
  func.func @transform_1(%arg0: i32) -> (i32, i32) {
    %c0_i32 = arith.constant 0 : i32
    %c0_i32_0 = arith.constant 0 : i32
    %c0_i32_1 = arith.constant 0 : i32
    return %c0_i32, %c0_i32_0 : i32, i32
  }
  func.func @transform_2(%arg0: i32) -> (i32, i32) {
    %c0_i32 = arith.constant 0 : i32
    %c0_i32_0 = arith.constant 0 : i32
    %c0_i32_1 = arith.constant 0 : i32
    return %c0_i32, %c0_i32_0 : i32, i32
  }
  func.func @transform_3(%arg0: i32) -> (i32, i32) {
    %c0_i32 = arith.constant 0 : i32
    %c0_i32_0 = arith.constant 0 : i32
    %c0_i32_1 = arith.constant 0 : i32
    return %c0_i32, %c0_i32_0 : i32, i32
  }
  func.func @transform_4(%arg0: i32) -> (i32, i32) {
    %c0_i32 = arith.constant 0 : i32
    %c0_i32_0 = arith.constant 0 : i32
    %c0_i32_1 = arith.constant 0 : i32
    return %c0_i32, %c0_i32_0 : i32, i32
  }
  func.func @transform_5(%arg0: i32) -> (i32, i32) {
    %c0_i32 = arith.constant 0 : i32
    %c0_i32_0 = arith.constant 0 : i32
    return %arg0, %c0_i32 : i32, i32
  }
  func.func @transform_6(%arg0: i32) -> (i32, i32) {
    %c0_i32 = arith.constant 0 : i32
    %c0_i32_0 = arith.constant 0 : i32
    %c0_i32_1 = arith.constant 0 : i32
    return %c0_i32, %c0_i32_0 : i32, i32
  }
  func.func @transform_7(%arg0: i32) -> (i32, i32) {
    %c0_i32 = arith.constant 0 : i32
    %c0_i32_0 = arith.constant 0 : i32
    %c0_i32_1 = arith.constant 0 : i32
    return %c0_i32, %c0_i32_0 : i32, i32
  }
  func.func @transform_8(%arg0: i32) -> (i32, i32) {
    %c0_i32 = arith.constant 0 : i32
    %c0_i32_0 = arith.constant 0 : i32
    return %arg0, %c0_i32 : i32, i32
  }
}

</mosaic_0001>

<llo_original>
// kernel: roberta_sarc_forward.10
$region0: #{roberta_sarc_forward.10}
  #allocation0 [shape = 'u32[]', space=smem, size = 0x4, offset = 0x4, fixed_abs, tag = 'smem constant byte address 0x4 - core index']
  #allocation1 [shape = 'u32[72,128]{1,0:T(1,128)}', space=vmem, size = 0x9000, scoped, tag = 'internal scratch']
  #allocation2 [shape = 'f32[16,96]{1,0:T(8,128)}', space=vmem, size = 0x2000, scoped, tag = 'scratch operand']
  %s0 = inlined_call_operand.vmem [shape: bf16[16,32], index: 0, kind: input, shape index: {}]
  %s1 = inlined_call_operand.vmem [shape: bf16[32,96], index: 1, kind: input, shape index: {}]
  %s2 = inlined_call_operand.vmem [shape: f32[1,96], index: 2, kind: input, shape index: {}]
  %s3 = inlined_call_operand.vmem [shape: bf16[16,96], index: 3, kind: output, shape index: {}]
  %s4 = sld [smem:[#allocation0]]
  $region30: #{roberta_sarc_forward.10} parent=0
    _
  %s6 = ssub.s32 1, %s4
  %s7 = scalar_select 0, %s6, %s4
  // Predicated region
  $region2: #{roberta_sarc_forward.10} parent=0 // pred_check
    _
  $region3: #{roberta_sarc_forward.10} parent=0 // pred_check_branch
    %9 = sbr.rel (0) target = $region5
  $region4: #{roberta_sarc_forward.10} parent=0 // pred_region
    _
  $region5: #{roberta_sarc_forward.10} parent=0 // pred_fallthru
    _
  // Predicated region
  $region6: #{roberta_sarc_forward.10} parent=0 // pred_check
    _
  $region7: #{roberta_sarc_forward.10} parent=0 // pred_check_branch
    %11 = sbr.rel (0) target = $region9
  $region8: #{roberta_sarc_forward.10} parent=0 // pred_region
    _
  $region9: #{roberta_sarc_forward.10} parent=0 // pred_fallthru
    _
  // Predicated region
  $region10: #{roberta_sarc_forward.10} parent=0 // pred_check
    _
  $region11: #{roberta_sarc_forward.10} parent=0 // pred_check_branch
    %13 = sbr.rel (0) target = $region13
  $region12: #{roberta_sarc_forward.10} parent=0 // pred_region
    _
  $region13: #{roberta_sarc_forward.10} parent=0 // pred_fallthru
    _
  %p15 = scmp.eq.s32.totalorder 0, 0
  // Predicated region
  $region14: #{roberta_sarc_forward.10} parent=0 // pred_check
    %p16 = pneg %p15
  $region15: #{roberta_sarc_forward.10} parent=0 // pred_check_branch
    %18 = sbr.rel (%p16) target = $region17
  $region16: #{roberta_sarc_forward.10} parent=0 // pred_region
    %vm19 = vcmask 785408
    %20 = vst.msk [vmem:[#allocation2] sm:$0xff] %vm19, 0.0
    %21 = vst.msk [vmem:[#allocation2 + $0x8] sm:$0xff] %vm19, 0.0
  $region17: #{roberta_sarc_forward.10} parent=0 // pred_fallthru
    _
  %v22 = vld [vmem:[#allocation2] sm:$0xff]
  %v23 = vld [vmem:[#allocation2 + $0x8] sm:$0xff]
  %v24 = vld [vmem:[%s0] sm:$0xf]
  %v25 = vld [vmem:[%s0 + $0x4] sm:$0xf]
  %v26 = vld [vmem:[%s1] sm:$0xf]
  %v27 = vld [vmem:[%s1 + $0x4] sm:$0xf]
  %v28 = vld [vmem:[%s1 + $0x8] sm:$0xf]
  %v29 = vld [vmem:[%s1 + $0xc] sm:$0xf]
  %v32 = vunpack.c.l.b16 %v24
  %v33 = vunpack.c.l.b16 %v25
  %v34 = vpack.c.b16 %v33, %v32
  %v39 = vunpack.c.l.b16 %v26
  %v40 = vunpack.c.l.b16 %v27
  %v41 = vunpack.c.l.b16 %v28
  %v42 = vunpack.c.l.b16 %v29
  %v43 = vpack.c.b16 %v40, %v39
  %v44 = vpack.c.b16 %v42, %v41
  %vm47 = vcmask 261120
  %v49 = vsel %vm47, %v34, 0
  %51 = vmatpush.bf16.msra.mxu0 0
  %52 = vmatpush.bf16.msra.mxu0 0
  %53 = vmatpush.bf16.msra.mxu0 0
  %54 = vmatpush.bf16.msra.mxu0 0
  %55 = vmatpush.bf16.msra.mxu0 0
  %56 = vmatpush.bf16.msra.mxu0 0
  %57 = vmatpush.bf16.msra.mxu0 %v44
  %58 = vmatpush.bf16.msra.mxu0 %v43
  %59 = vmatmul.bf16.gmra.mxu0 %v49
  %v60 = vpop.f32.mrf.mxu0
  %v61 = vadd.f32 0.0, %v60
  %v62 = vpop.f32.mrf.mxu0
  %v63 = vadd.f32 0.0, %v62
  %64 = vdwg.mxu0
  %v65 = vadd.f32 %v22, %v61
  %v66 = vadd.f32 %v23, %v63
  %vm67 = vcmask 785408
  %68 = vst.msk [vmem:[#allocation2] sm:$0xff] %vm67, %v65
  %69 = vst.msk [vmem:[#allocation2 + $0x8] sm:$0xff] %vm67, %v66
  // Predicated region
  $region18: #{roberta_sarc_forward.10} parent=0 // pred_check
    %p70 = pneg %p15
  $region19: #{roberta_sarc_forward.10} parent=0 // pred_check_branch
    %72 = sbr.rel (%p70) target = $region21
  $region20: #{roberta_sarc_forward.10} parent=0 // pred_region
    %v73 = vld [vmem:[#allocation2] sm:$0xff]
    %v74 = vld [vmem:[#allocation2 + $0x8] sm:$0xff]
    %v75 = vld [vmem:[%s2] sm:$0x1]
    %v77 = vperm.slane %v75, 0
    %v79 = vadd.f32 %v73, %v77
    %v80 = vadd.f32 %v74, %v77
    %v81 = vpack.c.bf16 %v79, %v79
    %v82 = vpack.c.bf16 %v80, %v80
    %vm83 = vcmask 781312
    %84 = vst.msk [vmem:[%s3] sm:$0xf] %vm83, %v81
    %85 = vst.msk [vmem:[%s3 + $0x4] sm:$0xf] %vm83, %v82
  $region21: #{roberta_sarc_forward.10} parent=0 // pred_fallthru
    _
  // Predicated region
  $region22: #{roberta_sarc_forward.10} parent=0 // pred_check
    _
  $region23: #{roberta_sarc_forward.10} parent=0 // pred_check_branch
    %87 = sbr.rel (0) target = $region25
  $region24: #{roberta_sarc_forward.10} parent=0 // pred_region
    _
  $region25: #{roberta_sarc_forward.10} parent=0 // pred_fallthru
    _
  // Predicated region
  $region26: #{roberta_sarc_forward.10} parent=0 // pred_check
    _
  $region27: #{roberta_sarc_forward.10} parent=0 // pred_check_branch
    %89 = sbr.rel (0) target = $region29
  $region28: #{roberta_sarc_forward.10} parent=0 // pred_region
    _
  $region29: #{roberta_sarc_forward.10} parent=0 // pred_fallthru
    _

// kernel: roberta_sarc_forward.11
$region0: #{roberta_sarc_forward.11}
  #allocation0 [shape = 'u32[]', space=smem, size = 0x4, offset = 0x4, fixed_abs, tag = 'smem constant byte address 0x4 - core index']
  #allocation1 [shape = 'u32[72,128]{1,0:T(1,128)}', space=vmem, size = 0x9000, scoped, tag = 'internal scratch']
  #allocation2 [shape = 'f32[8,1]{1,0:T(8,128)}', space=vmem, size = 0x1000, scoped, tag = 'scratch operand']
  #allocation3 [shape = 'f32[8,1]{1,0:T(8,128)}', space=vmem, size = 0x1000, scoped, tag = 'scratch operand']
  #allocation4 [shape = 'f32[8,16]{1,0:T(8,128)}', space=vmem, size = 0x1000, scoped, tag = 'scratch operand']
  %s0 = inlined_call_operand.vmem [shape: bf16[4,8,16], index: 0, kind: input, shape index: {}]
  %s1 = inlined_call_operand.vmem [shape: bf16[4,8,16], index: 1, kind: input, shape index: {}]
  %s2 = inlined_call_operand.vmem [shape: bf16[4,8,16], index: 2, kind: input, shape index: {}]
  %s3 = inlined_call_operand.vmem [shape: f32[4,1,8], index: 3, kind: input, shape index: {}]
  %s4 = inlined_call_operand.vmem [shape: bf16[4,8,16], index: 4, kind: output, shape index: {}]
  %s5 = sld [smem:[#allocation0]]
  $region57: #{roberta_sarc_forward.11} parent=0
    _
  %s7 = ssub.s32 1, %s5
  %s8 = scalar_select 0, %s7, %s5
  loop: start=0, step=1, limit=6
  $region2: #{roberta_sarc_forward.11} parent=0 // loop_pre_header
    _
  $region3: #{roberta_sarc_forward.11} parent=0 // loop_header
    %s10 = sphi 0, %s14
    %p11 = scmp.ge.s32.totalorder %s10, 6
    %s17 = sphi 0, %s36
    %s18 = sphi 0, %s32
    %s19 = sphi 0, %s28
    %s20 = sphi 0, %s17
    %s21 = sphi 0, %s18
    %s22 = sphi 0, %s19
    %s23 = sphi 0, %s20
    %s24 = sphi 0, %s21
    %s25 = sphi 0, %s22
    %s41 = sphi 0, %s43
    %s44 = sphi 0, %s41
    %s45 = sphi 0, %s44
    %s61 = sphi 0, %s45
    %s69 = sphi 0, %s71
    %s72 = sphi 0, %s69
    %s73 = sphi 0, %s72
    %s89 = sphi 0, %s73
    %s97 = sphi 0, %s99
    %s100 = sphi 0, %s97
    %s101 = sphi 0, %s100
    %s117 = sphi 0, %s101
    %s125 = sphi 0, %s127
    %s128 = sphi 0, %s125
    %s129 = sphi 0, %s128
    %s145 = sphi 0, %s129
    %s153 = sphi 0, %s155
    %s156 = sphi 0, %s153
    %s157 = sphi 0, %s156
    %s173 = sphi 0, %s157
  $region4: #{roberta_sarc_forward.11} parent=0 // loop_header_branch
    %13 = sbr.rel (%p11) target = $region8
  $region5: #{roberta_sarc_forward.11} parent=0 // loop_body
    %s15 = ssub.s32 %s10, 1
    %s16 = ssub.s32 %s10, 2
    %s26 = sadd.s32 1, %s19
    %p27 = scmp.ge.s32.totalorder %s26, 1
    %s28 = scalar_select %p27, 0, %s26
    %s29 = sadd.s32 1, %s18
    %s30 = scalar_select %p27, %s29, %s18
    %p31 = scmp.ge.s32.totalorder %s30, 1
    %s32 = scalar_select %p31, 0, %s30
    %s33 = sadd.s32 1, %s17
    %s34 = scalar_select %p31, %s33, %s17
    %p35 = scmp.ge.s32.totalorder %s34, 4
    %s36 = scalar_select %p35, 0, %s34
    %s37 = ssub.s32 %s17, %s36
    %s38 = ssub.s32 %s18, %s32
    %s39 = sor.u32 %s37, %s38
    %p40 = scmp.eq.s32.totalorder %s39, 0
    %s42 = sadd.s32 %s41, 1
    %s43 = scalar_select %p40, %s41, %s42
    %p46 = pneg %p40
    %p47 = scmp.eq.s32.totalorder %s10, 3
    %p48 = por %p46, %p47
    %p49 = scmp.ne.s32.totalorder %s41, %s44
    %p50 = scmp.eq.s32.totalorder %s10, 0
    %p51 = por %p49, %p50
    %p52 = scmp.ne.s32.totalorder %s41, %s44
    %p53 = scmp.eq.s32.totalorder %s15, 3
    %p54 = por %p52, %p53
    %p55 = scmp.ne.s32.totalorder %s44, %s45
    %p56 = scmp.eq.s32.totalorder %s15, 0
    %p57 = por %p55, %p56
    %p58 = scmp.ne.s32.totalorder %s44, %s45
    %p59 = scmp.eq.s32.totalorder %s16, 3
    %p60 = por %p58, %p59
    %p62 = scmp.ne.s32.totalorder %s45, %s61
    %p63 = scmp.eq.s32.totalorder %s16, 0
    %p64 = por %p62, %p63
    %s65 = ssub.s32 %s17, %s36
    %s66 = ssub.s32 %s19, %s28
    %s67 = sor.u32 %s65, %s66
    %p68 = scmp.eq.s32.totalorder %s67, 0
    %s70 = sadd.s32 %s69, 1
    %s71 = scalar_select %p68, %s69, %s70
    %p74 = pneg %p68
    %p75 = scmp.eq.s32.totalorder %s10, 3
    %p76 = por %p74, %p75
    %p77 = scmp.ne.s32.totalorder %s69, %s72
    %p78 = scmp.eq.s32.totalorder %s10, 0
    %p79 = por %p77, %p78
    %p80 = scmp.ne.s32.totalorder %s69, %s72
    %p81 = scmp.eq.s32.totalorder %s15, 3
    %p82 = por %p80, %p81
    %p83 = scmp.ne.s32.totalorder %s72, %s73
    %p84 = scmp.eq.s32.totalorder %s15, 0
    %p85 = por %p83, %p84
    %p86 = scmp.ne.s32.totalorder %s72, %s73
    %p87 = scmp.eq.s32.totalorder %s16, 3
    %p88 = por %p86, %p87
    %p90 = scmp.ne.s32.totalorder %s73, %s89
    %p91 = scmp.eq.s32.totalorder %s16, 0
    %p92 = por %p90, %p91
    %s93 = ssub.s32 %s17, %s36
    %s94 = ssub.s32 %s19, %s28
    %s95 = sor.u32 %s93, %s94
    %p96 = scmp.eq.s32.totalorder %s95, 0
    %s98 = sadd.s32 %s97, 1
    %s99 = scalar_select %p96, %s97, %s98
    %p102 = pneg %p96
    %p103 = scmp.eq.s32.totalorder %s10, 3
    %p104 = por %p102, %p103
    %p105 = scmp.ne.s32.totalorder %s97, %s100
    %p106 = scmp.eq.s32.totalorder %s10, 0
    %p107 = por %p105, %p106
    %p108 = scmp.ne.s32.totalorder %s97, %s100
    %p109 = scmp.eq.s32.totalorder %s15, 3
    %p110 = por %p108, %p109
    %p111 = scmp.ne.s32.totalorder %s100, %s101
    %p112 = scmp.eq.s32.totalorder %s15, 0
    %p113 = por %p111, %p112
    %p114 = scmp.ne.s32.totalorder %s100, %s101
    %p115 = scmp.eq.s32.totalorder %s16, 3
    %p116 = por %p114, %p115
    %p118 = scmp.ne.s32.totalorder %s101, %s117
    %p119 = scmp.eq.s32.totalorder %s16, 0
    %p120 = por %p118, %p119
    %s121 = ssub.s32 %s17, %s36
    %s122 = ssub.s32 %s19, %s28
    %s123 = sor.u32 %s121, %s122
    %p124 = scmp.eq.s32.totalorder %s123, 0
    %s126 = sadd.s32 %s125, 1
    %s127 = scalar_select %p124, %s125, %s126
    %p130 = pneg %p124
    %p131 = scmp.eq.s32.totalorder %s10, 3
    %p132 = por %p130, %p131
    %p133 = scmp.ne.s32.totalorder %s125, %s128
    %p134 = scmp.eq.s32.totalorder %s10, 0
    %p135 = por %p133, %p134
    %p136 = scmp.ne.s32.totalorder %s125, %s128
    %p137 = scmp.eq.s32.totalorder %s15, 3
    %p138 = por %p136, %p137
    %p139 = scmp.ne.s32.totalorder %s128, %s129
    %p140 = scmp.eq.s32.totalorder %s15, 0
    %p141 = por %p139, %p140
    %p142 = scmp.ne.s32.totalorder %s128, %s129
    %p143 = scmp.eq.s32.totalorder %s16, 3
    %p144 = por %p142, %p143
    %p146 = scmp.ne.s32.totalorder %s129, %s145
    %p147 = scmp.eq.s32.totalorder %s16, 0
    %p148 = por %p146, %p147
    %s149 = ssub.s32 %s17, %s36
    %s150 = ssub.s32 %s18, %s32
    %s151 = sor.u32 %s149, %s150
    %p152 = scmp.eq.s32.totalorder %s151, 0
    %s154 = sadd.s32 %s153, 1
    %s155 = scalar_select %p152, %s153, %s154
    %p158 = pneg %p152
    %p159 = scmp.eq.s32.totalorder %s10, 3
    %p160 = por %p158, %p159
    %p161 = scmp.ne.s32.totalorder %s153, %s156
    %p162 = scmp.eq.s32.totalorder %s10, 0
    %p163 = por %p161, %p162
    %p164 = scmp.ne.s32.totalorder %s153, %s156
    %p165 = scmp.eq.s32.totalorder %s15, 3
    %p166 = por %p164, %p165
    %p167 = scmp.ne.s32.totalorder %s156, %s157
    %p168 = scmp.eq.s32.totalorder %s15, 0
    %p169 = por %p167, %p168
    %p170 = scmp.ne.s32.totalorder %s156, %s157
    %p171 = scmp.eq.s32.totalorder %s16, 3
    %p172 = por %p170, %p171
    %p174 = scmp.ne.s32.totalorder %s157, %s173
    %p175 = scmp.eq.s32.totalorder %s16, 0
    %p176 = por %p174, %p175
    %p177 = scmp.le.s32.totalorder 1, %s10
    %p178 = scmp.lt.s32.totalorder %s10, 5
    %p179 = pnand %p177, %p178
    %p180 = pneg %p179
    // Predicated region
    $region9: #{roberta_sarc_forward.11} parent=5 // pred_check
      _
    $region10: #{roberta_sarc_forward.11} parent=5 // pred_check_branch
      %182 = sbr.rel (%p179) target = $region12
    $region11: #{roberta_sarc_forward.11} parent=5 // pred_region
      %s183 = ssub.s32 %s10, 1
    $region12: #{roberta_sarc_forward.11} parent=5 // pred_fallthru
      _
    %p184 = scmp.lt.s32.totalorder %s10, 4
    // Predicated region
    $region13: #{roberta_sarc_forward.11} parent=5 // pred_check
      %p185 = pneg %p184
    $region14: #{roberta_sarc_forward.11} parent=5 // pred_check_branch
      %187 = sbr.rel (%p185) target = $region16
    $region15: #{roberta_sarc_forward.11} parent=5 // pred_region
      // Predicated region
      $region17: #{roberta_sarc_forward.11} parent=15 // pred_check
        %p188 = pneg %p51
      $region18: #{roberta_sarc_forward.11} parent=15 // pred_check_branch
        %190 = sbr.rel (%p188) target = $region20
      $region19: #{roberta_sarc_forward.11} parent=15 // pred_region
        %p191 = scmp.lt.s32.totalorder %s17, 3
        %s192 = scalar_select %p191, %s17, 3
        %p193 = scmp.lt.s32.totalorder %s18, 0
        %s194 = scalar_select %p193, %s18, 0
        %s195 = sadd.s32 %s194, %s192
        %s196 = smul.addr %s195, 4
        %s197 = scalar_lea.vmem %s0, %s196
      $region20: #{roberta_sarc_forward.11} parent=15 // pred_fallthru
        _
      // Predicated region
      $region21: #{roberta_sarc_forward.11} parent=15 // pred_check
        %p198 = pneg %p79
      $region22: #{roberta_sarc_forward.11} parent=15 // pred_check_branch
        %200 = sbr.rel (%p198) target = $region24
      $region23: #{roberta_sarc_forward.11} parent=15 // pred_region
        %p201 = scmp.lt.s32.totalorder %s17, 3
        %s202 = scalar_select %p201, %s17, 3
        %p203 = scmp.lt.s32.totalorder %s19, 0
        %s204 = scalar_select %p203, %s19, 0
        %s205 = sadd.s32 %s204, %s202
        %s206 = smul.addr %s205, 4
        %s207 = scalar_lea.vmem %s1, %s206
      $region24: #{roberta_sarc_forward.11} parent=15 // pred_fallthru
        _
      // Predicated region
      $region25: #{roberta_sarc_forward.11} parent=15 // pred_check
        %p208 = pneg %p107
      $region26: #{roberta_sarc_forward.11} parent=15 // pred_check_branch
        %210 = sbr.rel (%p208) target = $region28
      $region27: #{roberta_sarc_forward.11} parent=15 // pred_region
        %p211 = scmp.lt.s32.totalorder %s17, 3
        %s212 = scalar_select %p211, %s17, 3
        %p213 = scmp.lt.s32.totalorder %s19, 0
        %s214 = scalar_select %p213, %s19, 0
        %s215 = sadd.s32 %s214, %s212
        %s216 = smul.addr %s215, 4
        %s217 = scalar_lea.vmem %s2, %s216
      $region28: #{roberta_sarc_forward.11} parent=15 // pred_fallthru
        _
      // Predicated region
      $region29: #{roberta_sarc_forward.11} parent=15 // pred_check
        %p218 = pneg %p135
      $region30: #{roberta_sarc_forward.11} parent=15 // pred_check_branch
        %220 = sbr.rel (%p218) target = $region32
      $region31: #{roberta_sarc_forward.11} parent=15 // pred_region
        %p221 = scmp.lt.s32.totalorder %s17, 3
        %s222 = scalar_select %p221, %s17, 3
        %p223 = scmp.lt.s32.totalorder %s19, 0
        %s224 = scalar_select %p223, %s19, 0
        %s225 = sadd.s32 %s224, %s222
        %s226 = scalar_lea.vmem %s3, %s225
      $region32: #{roberta_sarc_forward.11} parent=15 // pred_fallthru
        _
    $region16: #{roberta_sarc_forward.11} parent=5 // pred_fallthru
      _
    %p227 = scmp.le.s32.totalorder 1, %s10
    %p228 = scmp.lt.s32.totalorder %s10, 5
    %p229 = pnand %p227, %p228
    %p230 = pneg %p229
    // Predicated region
    $region33: #{roberta_sarc_forward.11} parent=5 // pred_check
      _
    $region34: #{roberta_sarc_forward.11} parent=5 // pred_check_branch
      %232 = sbr.rel (%p229) target = $region36
    $region35: #{roberta_sarc_forward.11} parent=5 // pred_region
      %s233 = ssub.s32 %s10, 1
      %p234 = scmp.lt.s32.totalorder %s20, 3
      %s235 = scalar_select %p234, %s20, 3
      %p236 = scmp.lt.s32.totalorder %s21, 0
      %s237 = scalar_select %p236, %s21, 0
      %s238 = sadd.s32 %s237, %s235
      %s239 = smul.addr %s238, 4
      %s240 = scalar_lea.vmem %s0, %s239
      %p241 = pneg %p57
      %p242 = pneg %p54
      %p243 = scmp.lt.s32.totalorder %s20, 3
      %s244 = scalar_select %p243, %s20, 3
      %p245 = scmp.lt.s32.totalorder %s22, 0
      %s246 = scalar_select %p245, %s22, 0
      %s247 = sadd.s32 %s246, %s244
      %s248 = smul.addr %s247, 4
      %s249 = scalar_lea.vmem %s1, %s248
      %p250 = pneg %p85
      %p251 = pneg %p82
      %p252 = scmp.lt.s32.totalorder %s20, 3
      %s253 = scalar_select %p252, %s20, 3
      %p254 = scmp.lt.s32.totalorder %s22, 0
      %s255 = scalar_select %p254, %s22, 0
      %s256 = sadd.s32 %s255, %s253
      %s257 = smul.addr %s256, 4
      %s258 = scalar_lea.vmem %s2, %s257
      %p259 = pneg %p113
      %p260 = pneg %p110
      %p261 = scmp.lt.s32.totalorder %s20, 3
      %s262 = scalar_select %p261, %s20, 3
      %p263 = scmp.lt.s32.totalorder %s22, 0
      %s264 = scalar_select %p263, %s22, 0
      %s265 = sadd.s32 %s264, %s262
      %s266 = scalar_lea.vmem %s3, %s265
      %p267 = pneg %p141
      %p268 = pneg %p138
      %p269 = pneg %p169
      %p270 = pneg %p166
      %p271 = scmp.lt.s32.totalorder %s20, 3
      %s272 = scalar_select %p271, %s20, 3
      %p273 = scmp.lt.s32.totalorder %s21, 0
      %s274 = scalar_select %p273, %s21, 0
      %s275 = sadd.s32 %s274, %s272
      %s276 = smul.addr %s275, 4
      %s277 = scalar_lea.vmem %s4, %s276
      %p278 = scmp.lt.s32.totalorder %s20, 3
      %s279 = scalar_select %p278, %s20, 3
      %p280 = scmp.lt.s32.totalorder %s21, 0
      %s281 = scalar_select %p280, %s21, 0
      %s282 = sadd.s32 %s281, %s279
      %s283 = smul.addr %s282, 4
      %s284 = scalar_lea.vmem %s0, %s283
      %p285 = scmp.lt.s32.totalorder %s20, 3
      %s286 = scalar_select %p285, %s20, 3
      %p287 = scmp.lt.s32.totalorder %s22, 0
      %s288 = scalar_select %p287, %s22, 0
      %s289 = sadd.s32 %s288, %s286
      %s290 = smul.addr %s289, 4
      %s291 = scalar_lea.vmem %s1, %s290
      %p292 = scmp.lt.s32.totalorder %s20, 3
      %s293 = scalar_select %p292, %s20, 3
      %p294 = scmp.lt.s32.totalorder %s22, 0
      %s295 = scalar_select %p294, %s22, 0
      %s296 = sadd.s32 %s295, %s293
      %s297 = smul.addr %s296, 4
      %s298 = scalar_lea.vmem %s2, %s297
      %p299 = scmp.lt.s32.totalorder %s20, 3
      %s300 = scalar_select %p299, %s20, 3
      %p301 = scmp.lt.s32.totalorder %s22, 0
      %s302 = scalar_select %p301, %s22, 0
      %s303 = sadd.s32 %s302, %s300
      %s304 = scalar_lea.vmem %s3, %s303
      %p305 = scmp.lt.s32.totalorder %s20, 3
      %s306 = scalar_select %p305, %s20, 3
      %p307 = scmp.lt.s32.totalorder %s21, 0
      %s308 = scalar_select %p307, %s21, 0
      %s309 = sadd.s32 %s308, %s306
      %s310 = smul.addr %s309, 4
      %s311 = scalar_lea.vmem %s4, %s310
      %p313 = scmp.eq.s32.totalorder %s22, 0
      // Predicated region
      $region37: #{roberta_sarc_forward.11} parent=35 // pred_check
        %p314 = pneg %p313
      $region38: #{roberta_sarc_forward.11} parent=35 // pred_check_branch
        %316 = sbr.rel (%p314) target = $region40
      $region39: #{roberta_sarc_forward.11} parent=35 // pred_region
        %vm317 = vcmask 7168
        %318 = vst.msk [vmem:[#allocation2] sm:$0xff] %vm317, -1e+30
        %319 = vst.msk [vmem:[#allocation3] sm:$0xff] %vm317, 0.0
        %vm320 = vcmask 130048
        %321 = vst.msk [vmem:[#allocation4] sm:$0xff] %vm320, 0.0
      $region40: #{roberta_sarc_forward.11} parent=35 // pred_fallthru
        _
      %v322 = vld [vmem:[%s284] sm:$0xf]
      %v323 = vld [vmem:[%s291] sm:$0xf]
      %v324 = vld [vmem:[%s304] sm:$0x1]
      %v326 = vperm.slane %v324, 0
      %vm328 = vcmask 130048
      %v330 = vsel %vm328, %v322, 0
      %v333 = vsel %vm328, %v323, 0
      %335 = vmatpush.bf16.xpose.msra.mxu0 0
      %336 = vmatpush.bf16.xpose.msra.mxu0 0
      %337 = vmatpush.bf16.xpose.msra.mxu0 0
      %338 = vmatpush.bf16.xpose.msra.mxu0 0
      %339 = vmatpush.bf16.xpose.msra.mxu0 0
      %340 = vmatpush.bf16.xpose.msra.mxu0 0
      %341 = vmatpush.bf16.xpose.msra.mxu0 0
      %342 = vmatpush.bf16.xpose.msra.mxu0 %v333
      %343 = vmatmul.bf16.gmra.mxu0 %v330
      %v344 = vpop.f32.mrf.mxu0
      %v345 = vadd.f32 %v326, %v344
      %v346 = vpop.f32.mrf.mxu0
      %347 = vdwg.mxu0
      %v348 = vld [vmem:[#allocation2] sm:$0xff]
      %vm349 = vcmask 64512
      %v350 = vsel %vm349, %v345, -inf
      %351 = vmax.xlane.f32.xlu0 %v350
      %v352 = vpop.xlane.xlu0 %351
      %v353 = vmax.f32 %v348, %v352
      %v354 = vsub.f32 %v348, %v353
      %v355 = vmul.f32 %v354, 1.442695
      %v356 = vpow.pop %v355
      %358 = vset.pattern.permute.xlu0 0
      %359 = vperm.xlu0 %358, %v353
      %v360 = vpop.permute.xlu0 %359
      %v362 = vsub.f32 %v345, %v360
      %v363 = vmul.f32 %v362, 1.442695
      %v364 = vpow.pop %v363
      %v365 = vld [vmem:[#allocation3] sm:$0xff]
      %v366 = vmul.f32 %v356, %v365
      %v367 = vsel %vm349, %v364, 0.0
      %368 = vadd.xlane.f32.xlu0 %v367
      %v369 = vpop.xlane.xlu0 %368
      %v370 = vadd.f32 %v366, %v369
      %vm371 = vcmask 7168
      %372 = vst.msk [vmem:[#allocation3] sm:$0xff] %vm371, %v370
      %v373 = vld [vmem:[#allocation4] sm:$0xff]
      %375 = vset.pattern.permute.xlu0 0
      %376 = vperm.xlu0 %375, %v356
      %v377 = vpop.permute.xlu0 %376
      %v379 = vmul.f32 %v377, %v373
      %v380 = vpack.c.bf16 %v364, %v364
      %v381 = vld [vmem:[%s298] sm:$0xf]
      %v383 = vsel %vm349, %v380, 0
      %vm385 = vcmask 1043456
      %v387 = vsel %vm385, %v381, 0
      %389 = vmatpush.bf16.msra.mxu0 0
      %390 = vmatpush.bf16.msra.mxu0 0
      %391 = vmatpush.bf16.msra.mxu0 0
      %392 = vmatpush.bf16.msra.mxu0 0
      %393 = vmatpush.bf16.msra.mxu0 0
      %394 = vmatpush.bf16.msra.mxu0 0
      %395 = vmatpush.bf16.msra.mxu0 0
      %396 = vmatpush.bf16.msra.mxu0 %v387
      %397 = vmatmul.bf16.gmra.mxu0 %v383
      %v398 = vpop.f32.mrf.mxu0
      %v399 = vadd.f32 0.0, %v398
      %v400 = vpop.f32.mrf.mxu0
      %401 = vdwg.mxu0
      %v402 = vadd.f32 %v379, %v399
      %403 = vst.msk [vmem:[#allocation4] sm:$0xff] %vm328, %v402
      %404 = vst.msk [vmem:[#allocation2] sm:$0xff] %vm371, %v353
      // Predicated region
      $region41: #{roberta_sarc_forward.11} parent=35 // pred_check
        %p405 = pneg %p313
      $region42: #{roberta_sarc_forward.11} parent=35 // pred_check_branch
        %407 = sbr.rel (%p405) target = $region44
      $region43: #{roberta_sarc_forward.11} parent=35 // pred_region
        %v408 = vld [vmem:[#allocation4] sm:$0xff]
        %v409 = vld [vmem:[#allocation3] sm:$0xff]
        %v410 = vrcp.pop %v409
        %412 = vset.pattern.permute.xlu0 0
        %413 = vperm.xlu0 %412, %v410
        %v414 = vpop.permute.xlu0 %413
        %v416 = vmul.f32 %v408, %v414
        %v417 = vpack.c.bf16 %v416, %v416
        %vm418 = vcmask 125952
        %419 = vst.msk [vmem:[%s311] sm:$0xf] %vm418, %v417
      $region44: #{roberta_sarc_forward.11} parent=35 // pred_fallthru
        _
      %p420 = scmp.lt.s32.totalorder %s20, 3
      %s421 = scalar_select %p420, %s20, 3
      %p422 = scmp.lt.s32.totalorder %s21, 0
      %s423 = scalar_select %p422, %s21, 0
      %s424 = sadd.s32 %s423, %s421
      %s425 = smul.addr %s424, 4
      %s426 = scalar_lea.vmem %s4, %s425
      // Predicated region
      $region45: #{roberta_sarc_forward.11} parent=35 // pred_check
        %p427 = pneg %p166
      $region46: #{roberta_sarc_forward.11} parent=35 // pred_check_branch
        %429 = sbr.rel (%p427) target = $region48
      $region47: #{roberta_sarc_forward.11} parent=35 // pred_region
        _
      $region48: #{roberta_sarc_forward.11} parent=35 // pred_fallthru
        _
    $region36: #{roberta_sarc_forward.11} parent=5 // pred_fallthru
      _
    %p430 = scmp.le.s32.totalorder 2, %s10
    // Predicated region
    $region49: #{roberta_sarc_forward.11} parent=5 // pred_check
      %p431 = pneg %p430
    $region50: #{roberta_sarc_forward.11} parent=5 // pred_check_branch
      %433 = sbr.rel (%p431) target = $region52
    $region51: #{roberta_sarc_forward.11} parent=5 // pred_region
      %s434 = ssub.s32 %s10, 2
      // Predicated region
      $region53: #{roberta_sarc_forward.11} parent=51 // pred_check
        %p435 = pneg %p172
      $region54: #{roberta_sarc_forward.11} parent=51 // pred_check_branch
        %437 = sbr.rel (%p435) target = $region56
      $region55: #{roberta_sarc_forward.11} parent=51 // pred_region
        %p438 = scmp.lt.s32.totalorder %s23, 3
        %s439 = scalar_select %p438, %s23, 3
        %p440 = scmp.lt.s32.totalorder %s24, 0
        %s441 = scalar_select %p440, %s24, 0
        %s442 = sadd.s32 %s441, %s439
        %s443 = smul.addr %s442, 4
        %s444 = scalar_lea.vmem %s4, %s443
      $region56: #{roberta_sarc_forward.11} parent=51 // pred_fallthru
        _
    $region52: #{roberta_sarc_forward.11} parent=5 // pred_fallthru
      _
  $region6: #{roberta_sarc_forward.11} parent=0 // loop_footer
    %s14 = sadd.s32 1, %s10
  $region7: #{roberta_sarc_forward.11} parent=0 // loop_footer_branch
    %9 = sbr.rel target = $region3
  $region8: #{roberta_sarc_forward.11} parent=0 // loop_exit
    _

// kernel: roberta_sarc_forward.9
$region0: #{roberta_sarc_forward.9}
  #allocation0 [shape = 'u32[]', space=smem, size = 0x4, offset = 0x4, fixed_abs, tag = 'smem constant byte address 0x4 - core index']
  #allocation1 [shape = 'u32[72,128]{1,0:T(1,128)}', space=vmem, size = 0x9000, scoped, tag = 'internal scratch']
  %s0 = inlined_call_operand.vmem [shape: f32[16,32], index: 0, kind: input, shape index: {}]
  %s1 = inlined_call_operand.vmem [shape: f32[1,32], index: 1, kind: input, shape index: {}]
  %s2 = inlined_call_operand.vmem [shape: f32[1,32], index: 2, kind: input, shape index: {}]
  %s3 = inlined_call_operand.vmem [shape: bf16[16,32], index: 3, kind: output, shape index: {}]
  %s4 = sld [smem:[#allocation0]]
  $region22: #{roberta_sarc_forward.9} parent=0
    _
  %s6 = ssub.s32 1, %s4
  %s7 = scalar_select 0, %s6, %s4
  // Predicated region
  $region2: #{roberta_sarc_forward.9} parent=0 // pred_check
    _
  $region3: #{roberta_sarc_forward.9} parent=0 // pred_check_branch
    %9 = sbr.rel (0) target = $region5
  $region4: #{roberta_sarc_forward.9} parent=0 // pred_region
    _
  $region5: #{roberta_sarc_forward.9} parent=0 // pred_fallthru
    _
  // Predicated region
  $region6: #{roberta_sarc_forward.9} parent=0 // pred_check
    _
  $region7: #{roberta_sarc_forward.9} parent=0 // pred_check_branch
    %11 = sbr.rel (0) target = $region9
  $region8: #{roberta_sarc_forward.9} parent=0 // pred_region
    _
  $region9: #{roberta_sarc_forward.9} parent=0 // pred_fallthru
    _
  // Predicated region
  $region10: #{roberta_sarc_forward.9} parent=0 // pred_check
    _
  $region11: #{roberta_sarc_forward.9} parent=0 // pred_check_branch
    %13 = sbr.rel (0) target = $region13
  $region12: #{roberta_sarc_forward.9} parent=0 // pred_region
    _
  $region13: #{roberta_sarc_forward.9} parent=0 // pred_fallthru
    _
  %v14 = vld [vmem:[%s0] sm:$0xff]
  %v15 = vld [vmem:[%s0 + $0x8] sm:$0xff]
  %vm16 = vcmask 261120
  %v17 = vsel %vm16, %v14, 0.0
  %18 = vadd.xlane.f32.xlu0 %v17
  %v19 = vpop.xlane.xlu0 %18
  %v20 = vsel %vm16, %v15, 0.0
  %21 = vadd.xlane.f32.xlu0 %v20
  %v22 = vpop.xlane.xlu0 %21
  %v23 = vrcp.pop 32.0
  %v24 = vmul.f32 32.0, %v23
  %v25 = vsub.f32 1.0, %v24
  %v26 = vmul.f32 %v23, %v25
  %v27 = vadd.f32 %v23, %v26
  %vm28 = vweird.f32 %v23
  %v29 = vsel %vm28, %v23, %v27
  %v30 = vmul.f32 %v19, %v29
  %v31 = vmul.f32 %v22, %v29
  %v32 = vsub.f32 %v14, %v30
  %v33 = vsub.f32 %v15, %v31
  %v34 = vmul.f32 %v32, %v32
  %v35 = vmul.f32 %v33, %v33
  %v36 = vsel %vm16, %v34, 0.0
  %37 = vadd.xlane.f32.xlu0 %v36
  %v38 = vpop.xlane.xlu0 %37
  %v39 = vsel %vm16, %v35, 0.0
  %40 = vadd.xlane.f32.xlu0 %v39
  %v41 = vpop.xlane.xlu0 %40
  %v42 = vmul.f32 %v38, %v29
  %v43 = vmul.f32 %v41, %v29
  %v44 = vadd.f32 %v42, 1e-05
  %v45 = vadd.f32 %v43, 1e-05
  %v46 = vrsqrt.pop %v44
  %v47 = vmul.f32 %v46, %v44
  %v48 = vmul.f32 %v47, %v46
  %v49 = vmul.f32 0.5, %v48
  %v50 = vsub.f32 1.5, %v49
  %v51 = vmul.f32 %v46, %v50
  %vm52 = vweird.f32 %v44
  %vm53 = vweird.f32 %v46
  %vm54 = vmor %vm52, %vm53
  %v55 = vsel %vm54, %v46, %v51
  %v56 = vrsqrt.pop %v45
  %v57 = vmul.f32 %v56, %v45
  %v58 = vmul.f32 %v57, %v56
  %v59 = vmul.f32 0.5, %v58
  %v60 = vsub.f32 1.5, %v59
  %v61 = vmul.f32 %v56, %v60
  %vm62 = vweird.f32 %v45
  %vm63 = vweird.f32 %v56
  %vm64 = vmor %vm62, %vm63
  %v65 = vsel %vm64, %v56, %v61
  %v66 = vmul.f32 %v32, %v55
  %v67 = vmul.f32 %v33, %v65
  %v68 = vld [vmem:[%s1] sm:$0x1]
  %v70 = vperm.slane %v68, 0
  %v72 = vmul.f32 %v66, %v70
  %v73 = vmul.f32 %v67, %v70
  %v74 = vld [vmem:[%s2] sm:$0x1]
  %v76 = vperm.slane %v74, 0
  %v78 = vadd.f32 %v72, %v76
  %v79 = vadd.f32 %v73, %v76
  %v80 = vpack.c.bf16 %v78, %v78
  %v81 = vpack.c.bf16 %v79, %v79
  %vm82 = vcmask 257024
  %83 = vst.msk [vmem:[%s3] sm:$0xf] %vm82, %v80
  %84 = vst.msk [vmem:[%s3 + $0x4] sm:$0xf] %vm82, %v81
  // Predicated region
  $region14: #{roberta_sarc_forward.9} parent=0 // pred_check
    _
  $region15: #{roberta_sarc_forward.9} parent=0 // pred_check_branch
    %86 = sbr.rel (0) target = $region17
  $region16: #{roberta_sarc_forward.9} parent=0 // pred_region
    _
  $region17: #{roberta_sarc_forward.9} parent=0 // pred_fallthru
    _
  // Predicated region
  $region18: #{roberta_sarc_forward.9} parent=0 // pred_check
    _
  $region19: #{roberta_sarc_forward.9} parent=0 // pred_check_branch
    %88 = sbr.rel (0) target = $region21
  $region20: #{roberta_sarc_forward.9} parent=0 // pred_region
    _
  $region21: #{roberta_sarc_forward.9} parent=0 // pred_fallthru
    _

// kernel: roberta_sarc_forward.12
$region0: #{roberta_sarc_forward.12}
  #allocation0 [shape = 'u32[]', space=smem, size = 0x4, offset = 0x4, fixed_abs, tag = 'smem constant byte address 0x4 - core index']
  #allocation1 [shape = 'u32[72,128]{1,0:T(1,128)}', space=vmem, size = 0x9000, scoped, tag = 'internal scratch']
  #allocation2 [shape = 'f32[16,32]{1,0:T(8,128)}', space=vmem, size = 0x2000, scoped, tag = 'scratch operand']
  %s0 = inlined_call_operand.vmem [shape: bf16[16,32], index: 0, kind: input, shape index: {}]
  %s1 = inlined_call_operand.vmem [shape: bf16[32,32], index: 1, kind: input, shape index: {}]
  %s2 = inlined_call_operand.vmem [shape: f32[1,32], index: 2, kind: input, shape index: {}]
  %s3 = inlined_call_operand.vmem [shape: bf16[16,32], index: 3, kind: input, shape index: {}]
  %s4 = inlined_call_operand.vmem [shape: f32[1,32], index: 4, kind: input, shape index: {}]
  %s5 = inlined_call_operand.vmem [shape: f32[1,32], index: 5, kind: input, shape index: {}]
  %s6 = inlined_call_operand.vmem [shape: bf16[16,32], index: 6, kind: output, shape index: {}]
  %s7 = sld [smem:[#allocation0]]
  $region42: #{roberta_sarc_forward.12} parent=0
    _
  %s9 = ssub.s32 1, %s7
  %s10 = scalar_select 0, %s9, %s7
  // Predicated region
  $region2: #{roberta_sarc_forward.12} parent=0 // pred_check
    _
  $region3: #{roberta_sarc_forward.12} parent=0 // pred_check_branch
    %12 = sbr.rel (0) target = $region5
  $region4: #{roberta_sarc_forward.12} parent=0 // pred_region
    _
  $region5: #{roberta_sarc_forward.12} parent=0 // pred_fallthru
    _
  // Predicated region
  $region6: #{roberta_sarc_forward.12} parent=0 // pred_check
    _
  $region7: #{roberta_sarc_forward.12} parent=0 // pred_check_branch
    %14 = sbr.rel (0) target = $region9
  $region8: #{roberta_sarc_forward.12} parent=0 // pred_region
    _
  $region9: #{roberta_sarc_forward.12} parent=0 // pred_fallthru
    _
  // Predicated region
  $region10: #{roberta_sarc_forward.12} parent=0 // pred_check
    _
  $region11: #{roberta_sarc_forward.12} parent=0 // pred_check_branch
    %16 = sbr.rel (0) target = $region13
  $region12: #{roberta_sarc_forward.12} parent=0 // pred_region
    _
  $region13: #{roberta_sarc_forward.12} parent=0 // pred_fallthru
    _
  // Predicated region
  $region14: #{roberta_sarc_forward.12} parent=0 // pred_check
    _
  $region15: #{roberta_sarc_forward.12} parent=0 // pred_check_branch
    %18 = sbr.rel (0) target = $region17
  $region16: #{roberta_sarc_forward.12} parent=0 // pred_region
    _
  $region17: #{roberta_sarc_forward.12} parent=0 // pred_fallthru
    _
  // Predicated region
  $region18: #{roberta_sarc_forward.12} parent=0 // pred_check
    _
  $region19: #{roberta_sarc_forward.12} parent=0 // pred_check_branch
    %20 = sbr.rel (0) target = $region21
  $region20: #{roberta_sarc_forward.12} parent=0 // pred_region
    _
  $region21: #{roberta_sarc_forward.12} parent=0 // pred_fallthru
    _
  // Predicated region
  $region22: #{roberta_sarc_forward.12} parent=0 // pred_check
    _
  $region23: #{roberta_sarc_forward.12} parent=0 // pred_check_branch
    %22 = sbr.rel (0) target = $region25
  $region24: #{roberta_sarc_forward.12} parent=0 // pred_region
    _
  $region25: #{roberta_sarc_forward.12} parent=0 // pred_fallthru
    _
  %p24 = scmp.eq.s32.totalorder 0, 0
  // Predicated region
  $region26: #{roberta_sarc_forward.12} parent=0 // pred_check
    %p25 = pneg %p24
  $region27: #{roberta_sarc_forward.12} parent=0 // pred_check_branch
    %27 = sbr.rel (%p25) target = $region29
  $region28: #{roberta_sarc_forward.12} parent=0 // pred_region
    %vm28 = vcmask 261120
    %29 = vst.msk [vmem:[#allocation2] sm:$0xff] %vm28, 0.0
    %30 = vst.msk [vmem:[#allocation2 + $0x8] sm:$0xff] %vm28, 0.0
  $region29: #{roberta_sarc_forward.12} parent=0 // pred_fallthru
    _
  %v31 = vld [vmem:[#allocation2] sm:$0xff]
  %v32 = vld [vmem:[#allocation2 + $0x8] sm:$0xff]
  %v33 = vld [vmem:[%s0] sm:$0xf]
  %v34 = vld [vmem:[%s0 + $0x4] sm:$0xf]
  %v35 = vld [vmem:[%s1] sm:$0xf]
  %v36 = vld [vmem:[%s1 + $0x4] sm:$0xf]
  %v37 = vld [vmem:[%s1 + $0x8] sm:$0xf]
  %v38 = vld [vmem:[%s1 + $0xc] sm:$0xf]
  %v41 = vunpack.c.l.b16 %v33
  %v42 = vunpack.c.l.b16 %v34
  %v43 = vpack.c.b16 %v42, %v41
  %v48 = vunpack.c.l.b16 %v35
  %v49 = vunpack.c.l.b16 %v36
  %v50 = vunpack.c.l.b16 %v37
  %v51 = vunpack.c.l.b16 %v38
  %v52 = vpack.c.b16 %v49, %v48
  %v53 = vpack.c.b16 %v51, %v50
  %vm56 = vcmask 261120
  %v58 = vsel %vm56, %v43, 0
  %60 = vmatpush.bf16.msra.mxu0 0
  %61 = vmatpush.bf16.msra.mxu0 0
  %62 = vmatpush.bf16.msra.mxu0 0
  %63 = vmatpush.bf16.msra.mxu0 0
  %64 = vmatpush.bf16.msra.mxu0 0
  %65 = vmatpush.bf16.msra.mxu0 0
  %66 = vmatpush.bf16.msra.mxu0 %v53
  %67 = vmatpush.bf16.msra.mxu0 %v52
  %68 = vmatmul.bf16.gmra.mxu0 %v58
  %v69 = vpop.f32.mrf.mxu0
  %v70 = vadd.f32 0.0, %v69
  %v71 = vpop.f32.mrf.mxu0
  %v72 = vadd.f32 0.0, %v71
  %73 = vdwg.mxu0
  %v74 = vadd.f32 %v31, %v70
  %v75 = vadd.f32 %v32, %v72
  %76 = vst.msk [vmem:[#allocation2] sm:$0xff] %vm56, %v74
  %77 = vst.msk [vmem:[#allocation2 + $0x8] sm:$0xff] %vm56, %v75
  // Predicated region
  $region30: #{roberta_sarc_forward.12} parent=0 // pred_check
    %p78 = pneg %p24
  $region31: #{roberta_sarc_forward.12} parent=0 // pred_check_branch
    %80 = sbr.rel (%p78) target = $region33
  $region32: #{roberta_sarc_forward.12} parent=0 // pred_region
    %v81 = vld [vmem:[#allocation2] sm:$0xff]
    %v82 = vld [vmem:[#allocation2 + $0x8] sm:$0xff]
    %v83 = vld [vmem:[%s2] sm:$0x1]
    %v85 = vperm.slane %v83, 0
    %v87 = vadd.f32 %v81, %v85
    %v88 = vadd.f32 %v82, %v85
    %v89 = vld [vmem:[%s3] sm:$0xf]
    %v90 = vld [vmem:[%s3 + $0x4] sm:$0xf]
    %v91 = vunpack.c.l.bf16 %v89
    %v92 = vunpack.c.l.bf16 %v90
    %v93 = vadd.f32 %v87, %v91
    %v94 = vadd.f32 %v88, %v92
    %v95 = vsel %vm56, %v93, 0.0
    %96 = vadd.xlane.f32.xlu0 %v95
    %v97 = vpop.xlane.xlu0 %96
    %v98 = vsel %vm56, %v94, 0.0
    %99 = vadd.xlane.f32.xlu0 %v98
    %v100 = vpop.xlane.xlu0 %99
    %v101 = vrcp.pop 32.0
    %v102 = vmul.f32 32.0, %v101
    %v103 = vsub.f32 1.0, %v102
    %v104 = vmul.f32 %v101, %v103
    %v105 = vadd.f32 %v101, %v104
    %vm106 = vweird.f32 %v101
    %v107 = vsel %vm106, %v101, %v105
    %v108 = vmul.f32 %v97, %v107
    %v109 = vmul.f32 %v100, %v107
    %v110 = vsub.f32 %v93, %v108
    %v111 = vsub.f32 %v94, %v109
    %v112 = vmul.f32 %v110, %v110
    %v113 = vmul.f32 %v111, %v111
    %v114 = vsel %vm56, %v112, 0.0
    %115 = vadd.xlane.f32.xlu0 %v114
    %v116 = vpop.xlane.xlu0 %115
    %v117 = vsel %vm56, %v113, 0.0
    %118 = vadd.xlane.f32.xlu0 %v117
    %v119 = vpop.xlane.xlu0 %118
    %v120 = vmul.f32 %v116, %v107
    %v121 = vmul.f32 %v119, %v107
    %v122 = vadd.f32 %v120, 1e-05
    %v123 = vadd.f32 %v121, 1e-05
    %v124 = vrsqrt.pop %v122
    %v125 = vmul.f32 %v124, %v122
    %v126 = vmul.f32 %v125, %v124
    %v127 = vmul.f32 0.5, %v126
    %v128 = vsub.f32 1.5, %v127
    %v129 = vmul.f32 %v124, %v128
    %vm130 = vweird.f32 %v122
    %vm131 = vweird.f32 %v124
    %vm132 = vmor %vm130, %vm131
    %v133 = vsel %vm132, %v124, %v129
    %v134 = vrsqrt.pop %v123
    %v135 = vmul.f32 %v134, %v123
    %v136 = vmul.f32 %v135, %v134
    %v137 = vmul.f32 0.5, %v136
    %v138 = vsub.f32 1.5, %v137
    %v139 = vmul.f32 %v134, %v138
    %vm140 = vweird.f32 %v123
    %vm141 = vweird.f32 %v134
    %vm142 = vmor %vm140, %vm141
    %v143 = vsel %vm142, %v134, %v139
    %v144 = vmul.f32 %v110, %v133
    %v145 = vmul.f32 %v111, %v143
    %v146 = vld [vmem:[%s4] sm:$0x1]
    %v148 = vperm.slane %v146, 0
    %v150 = vmul.f32 %v144, %v148
    %v151 = vmul.f32 %v145, %v148
    %v152 = vld [vmem:[%s5] sm:$0x1]
    %v154 = vperm.slane %v152, 0
    %v156 = vadd.f32 %v150, %v154
    %v157 = vadd.f32 %v151, %v154
    %v158 = vpack.c.bf16 %v156, %v156
    %v159 = vpack.c.bf16 %v157, %v157
    %vm160 = vcmask 257024
    %161 = vst.msk [vmem:[%s6] sm:$0xf] %vm160, %v158
    %162 = vst.msk [vmem:[%s6 + $0x4] sm:$0xf] %vm160, %v159
  $region33: #{roberta_sarc_forward.12} parent=0 // pred_fallthru
    _
  // Predicated region
  $region34: #{roberta_sarc_forward.12} parent=0 // pred_check
    _
  $region35: #{roberta_sarc_forward.12} parent=0 // pred_check_branch
    %164 = sbr.rel (0) target = $region37
  $region36: #{roberta_sarc_forward.12} parent=0 // pred_region
    _
  $region37: #{roberta_sarc_forward.12} parent=0 // pred_fallthru
    _
  // Predicated region
  $region38: #{roberta_sarc_forward.12} parent=0 // pred_check
    _
  $region39: #{roberta_sarc_forward.12} parent=0 // pred_check_branch
    %166 = sbr.rel (0) target = $region41
  $region40: #{roberta_sarc_forward.12} parent=0 // pred_region
    _
  $region41: #{roberta_sarc_forward.12} parent=0 // pred_fallthru
    _

// kernel: roberta_sarc_forward.13
$region0: #{roberta_sarc_forward.13}
  #allocation0 [shape = 'u32[]', space=smem, size = 0x4, offset = 0x4, fixed_abs, tag = 'smem constant byte address 0x4 - core index']
  #allocation1 [shape = 'u32[72,128]{1,0:T(1,128)}', space=vmem, size = 0x9000, scoped, tag = 'internal scratch']
  %s0 = inlined_call_operand.vmem [shape: bf16[16,32], index: 0, kind: input, shape index: {}, may-alias: {0,5}]
  %s1 = inlined_call_operand.vmem [shape: bf16[32,64], index: 1, kind: input, shape index: {}]
  %s2 = inlined_call_operand.vmem [shape: f32[1,64], index: 2, kind: input, shape index: {}]
  %s3 = inlined_call_operand.vmem [shape: bf16[64,32], index: 3, kind: input, shape index: {}]
  %s4 = inlined_call_operand.vmem [shape: f32[1,32], index: 4, kind: input, shape index: {}]
  %s5 = inlined_call_operand.vmem [shape: bf16[16,32], index: 5, kind: input, shape index: {}, may-alias: {0,5}]
  %s6 = inlined_call_operand.vmem [shape: f32[1,32], index: 6, kind: input, shape index: {}]
  %s7 = inlined_call_operand.vmem [shape: f32[1,32], index: 7, kind: input, shape index: {}]
  %s8 = inlined_call_operand.vmem [shape: bf16[16,32], index: 8, kind: output, shape index: {}]
  %s9 = sld [smem:[#allocation0]]
  $region42: #{roberta_sarc_forward.13} parent=0
    _
  %s11 = ssub.s32 1, %s9
  %s12 = scalar_select 0, %s11, %s9
  // Predicated region
  $region2: #{roberta_sarc_forward.13} parent=0 // pred_check
    _
  $region3: #{roberta_sarc_forward.13} parent=0 // pred_check_branch
    %14 = sbr.rel (0) target = $region5
  $region4: #{roberta_sarc_forward.13} parent=0 // pred_region
    _
  $region5: #{roberta_sarc_forward.13} parent=0 // pred_fallthru
    _
  // Predicated region
  $region6: #{roberta_sarc_forward.13} parent=0 // pred_check
    _
  $region7: #{roberta_sarc_forward.13} parent=0 // pred_check_branch
    %16 = sbr.rel (0) target = $region9
  $region8: #{roberta_sarc_forward.13} parent=0 // pred_region
    _
  $region9: #{roberta_sarc_forward.13} parent=0 // pred_fallthru
    _
  // Predicated region
  $region10: #{roberta_sarc_forward.13} parent=0 // pred_check
    _
  $region11: #{roberta_sarc_forward.13} parent=0 // pred_check_branch
    %18 = sbr.rel (0) target = $region13
  $region12: #{roberta_sarc_forward.13} parent=0 // pred_region
    _
  $region13: #{roberta_sarc_forward.13} parent=0 // pred_fallthru
    _
  // Predicated region
  $region14: #{roberta_sarc_forward.13} parent=0 // pred_check
    _
  $region15: #{roberta_sarc_forward.13} parent=0 // pred_check_branch
    %20 = sbr.rel (0) target = $region17
  $region16: #{roberta_sarc_forward.13} parent=0 // pred_region
    _
  $region17: #{roberta_sarc_forward.13} parent=0 // pred_fallthru
    _
  // Predicated region
  $region18: #{roberta_sarc_forward.13} parent=0 // pred_check
    _
  $region19: #{roberta_sarc_forward.13} parent=0 // pred_check_branch
    %22 = sbr.rel (0) target = $region21
  $region20: #{roberta_sarc_forward.13} parent=0 // pred_region
    _
  $region21: #{roberta_sarc_forward.13} parent=0 // pred_fallthru
    _
  // Predicated region
  $region22: #{roberta_sarc_forward.13} parent=0 // pred_check
    _
  $region23: #{roberta_sarc_forward.13} parent=0 // pred_check_branch
    %24 = sbr.rel (0) target = $region25
  $region24: #{roberta_sarc_forward.13} parent=0 // pred_region
    _
  $region25: #{roberta_sarc_forward.13} parent=0 // pred_fallthru
    _
  // Predicated region
  $region26: #{roberta_sarc_forward.13} parent=0 // pred_check
    _
  $region27: #{roberta_sarc_forward.13} parent=0 // pred_check_branch
    %26 = sbr.rel (0) target = $region29
  $region28: #{roberta_sarc_forward.13} parent=0 // pred_region
    _
  $region29: #{roberta_sarc_forward.13} parent=0 // pred_fallthru
    _
  // Predicated region
  $region30: #{roberta_sarc_forward.13} parent=0 // pred_check
    _
  $region31: #{roberta_sarc_forward.13} parent=0 // pred_check_branch
    %28 = sbr.rel (0) target = $region33
  $region32: #{roberta_sarc_forward.13} parent=0 // pred_region
    _
  $region33: #{roberta_sarc_forward.13} parent=0 // pred_fallthru
    _
  %v30 = vld [vmem:[%s0] sm:$0xf]
  %v31 = vld [vmem:[%s0 + $0x4] sm:$0xf]
  %v32 = vld [vmem:[%s1] sm:$0xf]
  %v33 = vld [vmem:[%s1 + $0x4] sm:$0xf]
  %v34 = vld [vmem:[%s1 + $0x8] sm:$0xf]
  %v35 = vld [vmem:[%s1 + $0xc] sm:$0xf]
  %v36 = vld [vmem:[%s2] sm:$0x1]
  %v38 = vperm.slane %v36, 0
  %v42 = vunpack.c.l.b16 %v30
  %v43 = vunpack.c.l.b16 %v31
  %v44 = vpack.c.b16 %v43, %v42
  %v49 = vunpack.c.l.b16 %v32
  %v50 = vunpack.c.l.b16 %v33
  %v51 = vunpack.c.l.b16 %v34
  %v52 = vunpack.c.l.b16 %v35
  %v53 = vpack.c.b16 %v50, %v49
  %v54 = vpack.c.b16 %v52, %v51
  %vm57 = vcmask 261120
  %v59 = vsel %vm57, %v44, 0
  %61 = vmatpush.bf16.msra.mxu0 0
  %62 = vmatpush.bf16.msra.mxu0 0
  %63 = vmatpush.bf16.msra.mxu0 0
  %64 = vmatpush.bf16.msra.mxu0 0
  %65 = vmatpush.bf16.msra.mxu0 0
  %66 = vmatpush.bf16.msra.mxu0 0
  %67 = vmatpush.bf16.msra.mxu0 %v54
  %68 = vmatpush.bf16.msra.mxu0 %v53
  %69 = vmatmul.bf16.gmra.mxu0 %v59
  %v70 = vpop.f32.mrf.mxu0
  %v71 = vadd.f32 %v38, %v70
  %v72 = vpop.f32.mrf.mxu0
  %v73 = vadd.f32 %v38, %v72
  %74 = vdwg.mxu0
  %v75 = vmul.f32 %v71, 0.5
  %v76 = vmul.f32 %v73, 0.5
  %v77 = vmul.f32 %v71, 0.044715
  %v78 = vmul.f32 %v73, 0.044715
  %v79 = vmul.f32 %v77, %v71
  %v80 = vmul.f32 %v78, %v73
  %v81 = vmul.f32 %v79, %v71
  %v82 = vmul.f32 %v80, %v73
  %v83 = vadd.f32 %v71, %v81
  %v84 = vadd.f32 %v73, %v82
  %v85 = vmul.f32 %v83, 0.7978846
  %v86 = vmul.f32 %v84, 0.7978846
  %v87 = vtanh.pop %v85
  %v88 = vtanh.pop %v86
  %v89 = vadd.f32 %v87, 1.0
  %v90 = vadd.f32 %v88, 1.0
  %v91 = vmul.f32 %v75, %v89
  %v92 = vmul.f32 %v76, %v90
  %v93 = vpack.c.bf16 %v92, %v91
  %v94 = vld [vmem:[%s3] sm:$0xf]
  %v95 = vld [vmem:[%s3 + $0x4] sm:$0xf]
  %v96 = vld [vmem:[%s3 + $0x8] sm:$0xf]
  %v97 = vld [vmem:[%s3 + $0xc] sm:$0xf]
  %v98 = vld [vmem:[%s3 + $0x10] sm:$0xf]
  %v99 = vld [vmem:[%s3 + $0x14] sm:$0xf]
  %v100 = vld [vmem:[%s3 + $0x18] sm:$0xf]
  %v101 = vld [vmem:[%s3 + $0x1c] sm:$0xf]
  %v102 = vld [vmem:[%s4] sm:$0x1]
  %v104 = vperm.slane %v102, 0
  %v114 = vunpack.c.l.b16 %v94
  %v115 = vunpack.c.l.b16 %v95
  %v116 = vunpack.c.l.b16 %v96
  %v117 = vunpack.c.l.b16 %v97
  %v118 = vunpack.c.l.b16 %v98
  %v119 = vunpack.c.l.b16 %v99
  %v120 = vunpack.c.l.b16 %v100
  %v121 = vunpack.c.l.b16 %v101
  %v122 = vpack.c.b16 %v115, %v114
  %v123 = vpack.c.b16 %v117, %v116
  %v124 = vpack.c.b16 %v119, %v118
  %v125 = vpack.c.b16 %v121, %v120
  %vm130 = vcmask 523264
  %v132 = vsel %vm130, %v93, 0
  %134 = vmatpush.bf16.msra.mxu0 0
  %135 = vmatpush.bf16.msra.mxu0 0
  %136 = vmatpush.bf16.msra.mxu0 0
  %137 = vmatpush.bf16.msra.mxu0 0
  %138 = vmatpush.bf16.msra.mxu0 %v125
  %139 = vmatpush.bf16.msra.mxu0 %v124
  %140 = vmatpush.bf16.msra.mxu0 %v123
  %141 = vmatpush.bf16.msra.mxu0 %v122
  %142 = vmatmul.bf16.gmra.mxu0 %v132
  %v143 = vpop.f32.mrf.mxu0
  %v144 = vadd.f32 %v104, %v143
  %v145 = vpop.f32.mrf.mxu0
  %v146 = vadd.f32 %v104, %v145
  %147 = vdwg.mxu0
  %v148 = vld [vmem:[%s5] sm:$0xf]
  %v149 = vld [vmem:[%s5 + $0x4] sm:$0xf]
  %v150 = vunpack.c.l.bf16 %v148
  %v151 = vunpack.c.l.bf16 %v149
  %v152 = vadd.f32 %v144, %v150
  %v153 = vadd.f32 %v146, %v151
  %v154 = vsel %vm57, %v152, 0.0
  %155 = vadd.xlane.f32.xlu0 %v154
  %v156 = vpop.xlane.xlu0 %155
  %v157 = vsel %vm57, %v153, 0.0
  %158 = vadd.xlane.f32.xlu0 %v157
  %v159 = vpop.xlane.xlu0 %158
  %v160 = vrcp.pop 32.0
  %v161 = vmul.f32 32.0, %v160
  %v162 = vsub.f32 1.0, %v161
  %v163 = vmul.f32 %v160, %v162
  %v164 = vadd.f32 %v160, %v163
  %vm165 = vweird.f32 %v160
  %v166 = vsel %vm165, %v160, %v164
  %v167 = vmul.f32 %v156, %v166
  %v168 = vmul.f32 %v159, %v166
  %v169 = vsub.f32 %v152, %v167
  %v170 = vsub.f32 %v153, %v168
  %v171 = vmul.f32 %v169, %v169
  %v172 = vmul.f32 %v170, %v170
  %v173 = vsel %vm57, %v171, 0.0
  %174 = vadd.xlane.f32.xlu0 %v173
  %v175 = vpop.xlane.xlu0 %174
  %v176 = vsel %vm57, %v172, 0.0
  %177 = vadd.xlane.f32.xlu0 %v176
  %v178 = vpop.xlane.xlu0 %177
  %v179 = vmul.f32 %v175, %v166
  %v180 = vmul.f32 %v178, %v166
  %v181 = vadd.f32 %v179, 1e-05
  %v182 = vadd.f32 %v180, 1e-05
  %v183 = vrsqrt.pop %v181
  %v184 = vmul.f32 %v183, %v181
  %v185 = vmul.f32 %v184, %v183
  %v186 = vmul.f32 0.5, %v185
  %v187 = vsub.f32 1.5, %v186
  %v188 = vmul.f32 %v183, %v187
  %vm189 = vweird.f32 %v181
  %vm190 = vweird.f32 %v183
  %vm191 = vmor %vm189, %vm190
  %v192 = vsel %vm191, %v183, %v188
  %v193 = vrsqrt.pop %v182
  %v194 = vmul.f32 %v193, %v182
  %v195 = vmul.f32 %v194, %v193
  %v196 = vmul.f32 0.5, %v195
  %v197 = vsub.f32 1.5, %v196
  %v198 = vmul.f32 %v193, %v197
  %vm199 = vweird.f32 %v182
  %vm200 = vweird.f32 %v193
  %vm201 = vmor %vm199, %vm200
  %v202 = vsel %vm201, %v193, %v198
  %v203 = vmul.f32 %v169, %v192
  %v204 = vmul.f32 %v170, %v202
  %v205 = vld [vmem:[%s6] sm:$0x1]
  %v207 = vperm.slane %v205, 0
  %v209 = vmul.f32 %v203, %v207
  %v210 = vmul.f32 %v204, %v207
  %v211 = vld [vmem:[%s7] sm:$0x1]
  %v213 = vperm.slane %v211, 0
  %v215 = vadd.f32 %v209, %v213
  %v216 = vadd.f32 %v210, %v213
  %v217 = vpack.c.bf16 %v215, %v215
  %v218 = vpack.c.bf16 %v216, %v216
  %vm219 = vcmask 257024
  %220 = vst.msk [vmem:[%s8] sm:$0xf] %vm219, %v217
  %221 = vst.msk [vmem:[%s8 + $0x4] sm:$0xf] %vm219, %v218
  // Predicated region
  $region34: #{roberta_sarc_forward.13} parent=0 // pred_check
    _
  $region35: #{roberta_sarc_forward.13} parent=0 // pred_check_branch
    %223 = sbr.rel (0) target = $region37
  $region36: #{roberta_sarc_forward.13} parent=0 // pred_region
    _
  $region37: #{roberta_sarc_forward.13} parent=0 // pred_fallthru
    _
  // Predicated region
  $region38: #{roberta_sarc_forward.13} parent=0 // pred_check
    _
  $region39: #{roberta_sarc_forward.13} parent=0 // pred_check_branch
    %225 = sbr.rel (0) target = $region41
  $region40: #{roberta_sarc_forward.13} parent=0 // pred_region
    _
  $region41: #{roberta_sarc_forward.13} parent=0 // pred_fallthru
    _

</llo_original>
